<compile_context>
chip_gen: v7x
topology: tpu7x:2x2x1
jax: 0.10.0
libtpu: 0.0.40
codegen_flags: <defaults>
</compile_context>

<pallas_src>
import functools

import jax
import jax.numpy as jnp
from jax.experimental import pallas as pl
from jax.experimental.pallas import tpu as pltpu

LANE = 128                    # lane width; feature dims / N padded to this
TM_TARGET = 512               # dst-row tile target for the aggregation matmul
TK_TARGET = 1024              # src (reduction) tile target
RESIDENT_VMEM_BUDGET = 24 * 1024 * 1024   # use resident-h below this estimate
DEFAULT_VMEM_LIMIT = 32 * 1024 * 1024     # >= v5e's 16 MiB default scoped
MAX_VMEM_LIMIT = 64 * 1024 * 1024         # <= v7x physical VMEM


def _round_up(x, m):
    return (x + m - 1) // m * m


def _pick_tile(n_pad, target):
    """Largest multiple of LANE that divides n_pad and is <= target."""
    t = max(LANE, min(target, n_pad))
    t = (t // LANE) * LANE
    while n_pad % t:
        t -= LANE
    return t


def _pick_row_tile(n_pad, target):
    """Row tile; keep >= 2 row tiles when possible so v7x megacore splits."""
    tm = _pick_tile(n_pad, target)
    if n_pad // tm < 2 and n_pad >= 2 * LANE:
        tm = _pick_tile(n_pad, n_pad // 2)
    return tm


def _pad2d(x, rows, cols, dtype):
    """Zero-pad a 2D array to (rows, cols) and cast."""
    r, c = x.shape
    out = jnp.zeros((rows, cols), dtype)
    return out.at[:r, :c].set(x.astype(dtype))


# ----------------------------- Pallas kernels ------------------------------ #

def _linear_kernel(x_ref, wT_ref, b_ref, m_ref, o_ref, *, apply_relu):
    """o = x @ W^T + rowmask * b   (optional ReLU).  f32 accumulation."""
    h = jnp.dot(x_ref[...], wT_ref[...], preferred_element_type=jnp.float32)
    h = h + m_ref[...] * b_ref[...]          # (tm,1) * (1,Cout_pad) broadcast
    if apply_relu:
        h = jnp.maximum(h, 0.0)
    o_ref[...] = h.astype(o_ref.dtype)


def _agg_kernel(a_ref, h_ref, inv_ref, o_ref, acc_ref, *,
                apply_relu, tk, h_resident):
    """o = inv_deg * (counts @ h); f32 accumulation over the K (src) axis."""
    k = pl.program_id(1)

    @pl.when(k == 0)
    def _():
        acc_ref[...] = jnp.zeros_like(acc_ref)

    if h_resident:
        # h_ref holds the full (n_pad, c_pad) operand (DMA'd once); slice the
        # current K window.
        start = pl.multiple_of(k * tk, LANE)
        h = h_ref[pl.ds(start, tk), :]
    else:
        h = h_ref[...]

    a = a_ref[...].astype(jnp.bfloat16)      # int8 counts -> bf16 (VPU cast)
    acc_ref[...] += jnp.dot(a, h, preferred_element_type=jnp.float32)

    @pl.when(k == pl.num_programs(1) - 1)
    def _():
        out = acc_ref[...] * inv_ref[...]    # f32 1/deg applied at finalize
        if apply_relu:
            out = jnp.maximum(out, 0.0)
        o_ref[...] = out.astype(o_ref.dtype)


# ----------------------------- pallas_call wrappers ------------------------ #

def _vmem_limit_from(est_bytes):
    return int(min(MAX_VMEM_LIMIT, max(DEFAULT_VMEM_LIMIT, est_bytes * 5 // 4)))


def linear_pallas(x_pad, wT_pad, b_pad, rowmask_pad, *, apply_relu, out_dtype):
    """Row-tiled dense linear: [N_pad, Cin_pad] @ [Cin_pad, Cout_pad]."""
    n_pad, cin_pad = x_pad.shape
    cout_pad = wT_pad.shape[1]
    tm = _pick_row_tile(n_pad, TM_TARGET)
    grid = (n_pad // tm,)

    out_b = jnp.dtype(out_dtype).itemsize
    est = (2 * tm * cin_pad * 2 + 2 * cin_pad * cout_pad * 2
           + 2 * cout_pad * 4 + 2 * tm * 4 + 2 * tm * cout_pad * out_b)

    kernel = functools.partial(_linear_kernel, apply_relu=apply_relu)
    return pl.pallas_call(
        kernel,
        out_shape=jax.ShapeDtypeStruct((n_pad, cout_pad), out_dtype),
        grid_spec=pltpu.PrefetchScalarGridSpec(
            num_scalar_prefetch=0,
            grid=grid,
            in_specs=[
                pl.BlockSpec((tm, cin_pad), lambda i: (i, 0)),
                pl.BlockSpec((cin_pad, cout_pad), lambda i: (0, 0)),
                pl.BlockSpec((1, cout_pad), lambda i: (0, 0)),
                pl.BlockSpec((tm, 1), lambda i: (i, 0)),
            ],
            out_specs=pl.BlockSpec((tm, cout_pad), lambda i: (i, 0)),
        ),
        compiler_params=pltpu.CompilerParams(
            dimension_semantics=("parallel",),
            vmem_limit_bytes=_vmem_limit_from(est)),
    )(x_pad, wT_pad, b_pad, rowmask_pad)


def _agg_vmem_bytes(n_pad, c_pad, tm, tk, out_b, resident):
    a_bytes = 2 * tm * tk * 1                                   # int8, 2 bufs
    h_bytes = 2 * (n_pad if resident else tk) * c_pad * 2       # bf16
    inv_bytes = 2 * tm * 4
    acc_bytes = tm * c_pad * 4
    o_bytes = 2 * tm * c_pad * out_b
    return a_bytes + h_bytes + inv_bytes + acc_bytes + o_bytes


def agg_pallas(counts, h, inv_deg, *, apply_relu, out_dtype):
    """out = inv_deg * (counts @ h); counts is [N_pad, N_pad] int8."""
    n_pad = counts.shape[0]
    c_pad = h.shape[1]
    tm = _pick_row_tile(n_pad, TM_TARGET)
    tk = _pick_tile(n_pad, TK_TARGET)
    out_b = jnp.dtype(out_dtype).itemsize

    # Keep h fully VMEM-resident when it (and the tiles) comfortably fit the
    # scoped budget on every generation (incl. v7x's 64 MiB physical VMEM);
    # otherwise stream h in K tiles.
    resident = _agg_vmem_bytes(n_pad, c_pad, tm, tk, out_b,
                               True) <= RESIDENT_VMEM_BUDGET
    est = _agg_vmem_bytes(n_pad, c_pad, tm, tk, out_b, resident)

    grid = (n_pad // tm, n_pad // tk)        # reduction (K) axis last
    if resident:
        h_spec = pl.BlockSpec((n_pad, c_pad), lambda i, k: (0, 0))
    else:
        h_spec = pl.BlockSpec((tk, c_pad), lambda i, k: (k, 0))

    kernel = functools.partial(_agg_kernel, apply_relu=apply_relu,
                               tk=tk, h_resident=resident)
    return pl.pallas_call(
        kernel,
        out_shape=jax.ShapeDtypeStruct((n_pad, c_pad), out_dtype),
        grid_spec=pltpu.PrefetchScalarGridSpec(
            num_scalar_prefetch=0,
            grid=grid,
            in_specs=[
                pl.BlockSpec((tm, tk), lambda i, k: (i, k)),   # int8 counts
                h_spec,                                        # bf16 features
                pl.BlockSpec((tm, 1), lambda i, k: (i, 0)),    # f32 inv_deg
            ],
            out_specs=pl.BlockSpec((tm, c_pad), lambda i, k: (i, 0)),
            scratch_shapes=[pltpu.VMEM((tm, c_pad), jnp.float32)],
        ),
        compiler_params=pltpu.CompilerParams(
            dimension_semantics=("parallel", "arbitrary"),
            vmem_limit_bytes=_vmem_limit_from(est)),
    )(counts, h, inv_deg)


# -------------------------------- JAX glue --------------------------------- #

def preprocess_block(edge_index, num_nodes, n_pad):
    """Build per-layer aggregation operands directly in storage dtype.

    counts[d, s] = #edges s->d (int8, padded to n_pad x n_pad, padded rows and
    columns exactly zero).  inv_deg[d] = 1/in_degree(d) (f32, 0 for isolated).
    rowmask[d] = 1 if in_degree(d) > 0 else 0.  Static graphs: call once,
    outside the jitted forward.
    """
    del num_nodes  # edges index < num_nodes <= n_pad; padding stays zero
    src = edge_index[0]
    dst = edge_index[1]
    counts = jnp.zeros((n_pad, n_pad), jnp.int8)
    counts = counts.at[dst, src].add(jnp.ones(src.shape, jnp.int8))
    deg = jnp.zeros((n_pad,), jnp.float32).at[dst].add(1.0)
    inv_deg = jnp.where(deg > 0.0, 1.0 / jnp.maximum(deg, 1.0),
                        0.0).reshape(n_pad, 1)
    rowmask = (deg > 0.0).astype(jnp.float32).reshape(n_pad, 1)
    return counts, inv_deg, rowmask


def init_linear_params(key, in_c, out_c):
    """Deterministic init mimicking nn.Linear.reset_parameters (uniform)."""
    kw, kb = jax.random.split(key)
    bound = 1.0 / jnp.sqrt(jnp.float32(in_c))
    w = jax.random.uniform(kw, (out_c, in_c), jnp.float32, -bound, bound)
    b = jax.random.uniform(kb, (out_c,), jnp.float32, -bound, bound)
    return w, b


def sage_forward(x, agg_blocks, params, num_nodes):
    """SAGE.forward: layers of (linear -> scatter-mean), ReLU except last."""
    num_layers = len(params)
    n_pad = agg_blocks[0][0].shape[0]

    cin0 = x.shape[1]
    x_pad = _pad2d(x, n_pad, _round_up(cin0, LANE), jnp.bfloat16)
    ones_col = jnp.ones((n_pad, 1), jnp.float32)

    for i, (counts, inv_deg, rowmask) in enumerate(agg_blocks):
        w, b = params[i]                               # w: [Cout, Cin]
        cout, cin = w.shape
        cin_pad = _round_up(cin, LANE)
        cout_pad = _round_up(cout, LANE)

        wT_pad = _pad2d(w.T, cin_pad, cout_pad, jnp.bfloat16)
        b_pad = _pad2d(b.reshape(1, cout), 1, cout_pad, jnp.float32)

        is_last = (i == num_layers - 1)
        relu = not is_last
        out_dtype = jnp.float32 if is_last else jnp.bfloat16

        if cin_pad < cout_pad:
            # aggregate-first: (A @ x) @ W^T + rowsum(A)*b  (narrower N^2 op)
            agg = agg_pallas(counts, x_pad, inv_deg, apply_relu=False,
                             out_dtype=jnp.bfloat16)
            x_pad = linear_pallas(agg, wT_pad, b_pad, rowmask,
                                  apply_relu=relu, out_dtype=out_dtype)
        else:
            # transform-first (preferred on padded-width ties): A @ (x W^T + b)
            h = linear_pallas(x_pad, wT_pad, b_pad, ones_col,
                              apply_relu=False, out_dtype=jnp.bfloat16)
            x_pad = agg_pallas(counts, h, inv_deg, apply_relu=relu,
                               out_dtype=out_dtype)
        # dropout: eval mode -> identity

    out_c = params[-1][0].shape[0]
    return x_pad[:num_nodes, :out_c].astype(jnp.float32)


def sage_reference(x, blocks, params, num_nodes):
    """Pure-JAX f32 reference of the same forward pass."""
    h = x
    for i, (w, b) in enumerate(params):
        src, dst = blocks[i][0], blocks[i][1]
        hw = h @ w.T + b
        agg = jnp.zeros((num_nodes, hw.shape[1]), jnp.float32).at[dst].add(hw[src])
        deg = jnp.zeros((num_nodes,), jnp.float32).at[dst].add(1.0)
        h = jnp.where(deg[:, None] > 0.0,
                      agg / jnp.maximum(deg, 1.0)[:, None], 0.0)
        if i != len(params) - 1:
            h = jnp.maximum(h, 0.0)
    return h


# --------------------------------- Demo ------------------------------------ #

if __name__ == "__main__":
    key = jax.random.PRNGKey(0)

    N = 64            # number of nodes
    IN_C = 16         # in_channel
    HID = 32          # hidden_channel
    NUM_CLASSES = 8   # num_classes
    E = 256           # edges per block

    k_feat, k_e0, k_e1, k_p0, k_p1 = jax.random.split(key, 5)

    x = jax.random.normal(k_feat, (N, IN_C), jnp.float32)
    blocks = [
        jax.random.randint(k_e0, (2, E), 0, N, jnp.int32),
        jax.random.randint(k_e1, (2, E), 0, N, jnp.int32),
    ]
    # SAGE(in_channel=IN_C, hidden_channel=HID, num_classes=NUM_CLASSES,
    #      num_layers=2)
    params = [
        init_linear_params(k_p0, IN_C, HID),
        init_linear_params(k_p1, HID, NUM_CLASSES),
    ]

    # Graph is static: build the padded int8 counts / f32 inv_deg ONCE,
    # outside the per-forward jit (no per-step N^2 XLA passes).
    n_pad = _round_up(max(N, 1), LANE)
    agg_blocks = [preprocess_block(e, N, n_pad) for e in blocks]
    agg_blocks = jax.block_until_ready(agg_blocks)

    fwd = jax.jit(sage_forward, static_argnums=(3,))
    out = jax.block_until_ready(fwd(x, agg_blocks, params, N))

    assert out.shape == (N, NUM_CLASSES), out.shape
    assert bool(jnp.all(jnp.isfinite(out)))

    # Consistency check vs f32 reference (kernel uses exact int8 counts +
    # f32 inv_deg, bf16 features with f32 accumulation).
    ref = sage_reference(x, blocks, params, N)
    rel = jnp.linalg.norm(out - ref) / jnp.maximum(jnp.linalg.norm(ref), 1e-6)
    assert float(rel) < 0.05, float(rel)

    print("KERNEL_OK")
</pallas_src>

<mosaic_0001>
module attributes {stable_mosaic.version = 11 : i64} {
  func.func @_linear_kernel(%arg0: i32, %arg1: memref<128x128xbf16, #tpu.memory_space<vmem>>, %arg2: memref<128x128xbf16, #tpu.memory_space<vmem>>, %arg3: memref<1x128xf32, #tpu.memory_space<vmem>>, %arg4: memref<128x1xf32, #tpu.memory_space<vmem>>, %arg5: memref<128x128xbf16, #tpu.memory_space<vmem>>) attributes {dimension_semantics = [#tpu.dimension_semantics<parallel>], iteration_bounds = array<i64: 1>, scalar_prefetch = 0 : i64, scratch_operands = 0 : i64, tpu.core_type = #tpu.core_type<tc>, window_params = [{transform_indices = @transform_0, window_bounds = array<i64: 128, 128>}, {pipeline_mode = #tpu.pipeline_mode<synchronous>, transform_indices = @transform_1, window_bounds = array<i64: 128, 128>}, {pipeline_mode = #tpu.pipeline_mode<synchronous>, transform_indices = @transform_2, window_bounds = array<i64: 1, 128>}, {transform_indices = @transform_3, window_bounds = array<i64: 128, 1>}, {transform_indices = @transform_4, window_bounds = array<i64: 128, 128>}]} {
    %c0 = arith.constant 0 : index
    %c0_0 = arith.constant 0 : index
    %0 = vector.load %arg1[%c0, %c0_0] : memref<128x128xbf16, #tpu.memory_space<vmem>>, vector<128x128xbf16>
    %c0_1 = arith.constant 0 : index
    %c0_2 = arith.constant 0 : index
    %1 = vector.load %arg2[%c0_1, %c0_2] : memref<128x128xbf16, #tpu.memory_space<vmem>>, vector<128x128xbf16>
    %cst = arith.constant dense<0.000000e+00> : vector<128x128xf32>
    %2 = tpu.matmul %0, %1, %cst {dimension_numbers = #tpu.dot_dimension_numbers<[1], [0], [0], [1], [0, 0, 1, 1], [], []>} : vector<128x128xbf16>, vector<128x128xbf16>, vector<128x128xf32> -> vector<128x128xf32>
    %c0_3 = arith.constant 0 : index
    %c0_4 = arith.constant 0 : index
    %3 = vector.load %arg4[%c0_3, %c0_4] : memref<128x1xf32, #tpu.memory_space<vmem>>, vector<128x1xf32>
    %c0_5 = arith.constant 0 : index
    %c0_6 = arith.constant 0 : index
    %4 = vector.load %arg3[%c0_5, %c0_6] : memref<1x128xf32, #tpu.memory_space<vmem>>, vector<1x128xf32>
    %5 = vector.broadcast %3 : vector<128x1xf32> to vector<128x128xf32>
    %6 = vector.broadcast %4 : vector<1x128xf32> to vector<128x128xf32>
    %7 = arith.mulf %5, %6 : vector<128x128xf32>
    %8 = arith.addf %2, %7 : vector<128x128xf32>
    %9 = arith.truncf %8 : vector<128x128xf32> to vector<128x128xbf16>
    %c0_7 = arith.constant 0 : index
    %c0_8 = arith.constant 0 : index
    %10 = vector.load %arg5[%c0_7, %c0_8] : memref<128x128xbf16, #tpu.memory_space<vmem>>, vector<128x128xbf16>
    tpu.vector_store %arg5[%c0_7, %c0_8], %9 {strides = array<i32>} : memref<128x128xbf16, #tpu.memory_space<vmem>>, vector<128x128xbf16>,
    return
  }
  func.func @transform_0(%arg0: i32) -> (i32, i32) {
    %c0_i32 = arith.constant 0 : i32
    %c0_i32_0 = arith.constant 0 : i32
    return %arg0, %c0_i32 : i32, i32
  }
  func.func @transform_1(%arg0: i32) -> (i32, i32) {
    %c0_i32 = arith.constant 0 : i32
    %c0_i32_0 = arith.constant 0 : i32
    %c0_i32_1 = arith.constant 0 : i32
    return %c0_i32, %c0_i32_0 : i32, i32
  }
  func.func @transform_2(%arg0: i32) -> (i32, i32) {
    %c0_i32 = arith.constant 0 : i32
    %c0_i32_0 = arith.constant 0 : i32
    %c0_i32_1 = arith.constant 0 : i32
    return %c0_i32, %c0_i32_0 : i32, i32
  }
  func.func @transform_3(%arg0: i32) -> (i32, i32) {
    %c0_i32 = arith.constant 0 : i32
    %c0_i32_0 = arith.constant 0 : i32
    return %arg0, %c0_i32 : i32, i32
  }
  func.func @transform_4(%arg0: i32) -> (i32, i32) {
    %c0_i32 = arith.constant 0 : i32
    %c0_i32_0 = arith.constant 0 : i32
    return %arg0, %c0_i32 : i32, i32
  }
}

module attributes {stable_mosaic.version = 11 : i64} {
  func.func @_agg_kernel(%arg0: i32, %arg1: i32, %arg2: memref<128x128xi8, #tpu.memory_space<vmem>>, %arg3: memref<128x128xbf16, #tpu.memory_space<vmem>>, %arg4: memref<128x1xf32, #tpu.memory_space<vmem>>, %arg5: memref<128x128xbf16, #tpu.memory_space<vmem>>, %arg6: memref<128x128xf32, #tpu.memory_space<vmem>>) attributes {dimension_semantics = [#tpu.dimension_semantics<parallel>, #tpu.dimension_semantics<arbitrary>], iteration_bounds = array<i64: 1, 1>, scalar_prefetch = 0 : i64, scratch_operands = 1 : i64, tpu.core_type = #tpu.core_type<tc>, window_params = [{transform_indices = @transform_0, window_bounds = array<i64: 128, 128>}, {pipeline_mode = #tpu.pipeline_mode<synchronous>, transform_indices = @transform_1, window_bounds = array<i64: 128, 128>}, {transform_indices = @transform_2, window_bounds = array<i64: 128, 1>}, {transform_indices = @transform_3, window_bounds = array<i64: 128, 128>}]} {
    %c0_i32 = arith.constant 0 : i32
    %0 = arith.cmpi eq, %arg1, %c0_i32 : i32
    %1 = arith.extui %0 : i1 to i32
    %c0_i32_0 = arith.constant 0 : i32
    %2 = arith.cmpi ne, %1, %c0_i32_0 : i32
    scf.if %2 {
      %cst_9 = arith.constant 0.000000e+00 : f32
      %16 = vector.broadcast %cst_9 : f32 to vector<128x128xf32>
      %c0_10 = arith.constant 0 : index
      %c0_11 = arith.constant 0 : index
      %17 = vector.load %arg6[%c0_10, %c0_11] : memref<128x128xf32, #tpu.memory_space<vmem>>, vector<128x128xf32>
      tpu.vector_store %arg6[%c0_10, %c0_11], %16 {strides = array<i32>} : memref<128x128xf32, #tpu.memory_space<vmem>>, vector<128x128xf32>,
    } else {
    }
    %c128_i32 = arith.constant 128 : i32
    %3 = arith.muli %arg1, %c128_i32 : i32
    %4 = tpu.assume_multiple %3, 128 : i32
    %5 = arith.index_cast %4 : i32 to index
    %c0 = arith.constant 0 : index
    %6 = vector.load %arg3[%5, %c0] : memref<128x128xbf16, #tpu.memory_space<vmem>>, vector<128x128xbf16>
    %c0_1 = arith.constant 0 : index
    %c0_2 = arith.constant 0 : index
    %7 = vector.load %arg2[%c0_1, %c0_2] : memref<128x128xi8, #tpu.memory_space<vmem>>, vector<128x128xi8>
    %8 = arith.sitofp %7 : vector<128x128xi8> to vector<128x128xbf16>
    %c0_3 = arith.constant 0 : index
    %c0_4 = arith.constant 0 : index
    %9 = vector.load %arg6[%c0_3, %c0_4] : memref<128x128xf32, #tpu.memory_space<vmem>>, vector<128x128xf32>
    %cst = arith.constant dense<0.000000e+00> : vector<128x128xf32>
    %10 = tpu.matmul %8, %6, %cst {dimension_numbers = #tpu.dot_dimension_numbers<[1], [0], [0], [1], [0, 0, 1, 1], [], []>} : vector<128x128xbf16>, vector<128x128xbf16>, vector<128x128xf32> -> vector<128x128xf32>
    %11 = arith.addf %9, %10 : vector<128x128xf32>
    %c0_5 = arith.constant 0 : index
    %c0_6 = arith.constant 0 : index
    %12 = vector.load %arg6[%c0_5, %c0_6] : memref<128x128xf32, #tpu.memory_space<vmem>>, vector<128x128xf32>
    tpu.vector_store %arg6[%c0_5, %c0_6], %11 {strides = array<i32>} : memref<128x128xf32, #tpu.memory_space<vmem>>, vector<128x128xf32>,
    %c0_i32_7 = arith.constant 0 : i32
    %13 = arith.cmpi eq, %arg1, %c0_i32_7 : i32
    %14 = arith.extui %13 : i1 to i32
    %c0_i32_8 = arith.constant 0 : i32
    %15 = arith.cmpi ne, %14, %c0_i32_8 : i32
    scf.if %15 {
      %c0_9 = arith.constant 0 : index
      %c0_10 = arith.constant 0 : index
      %16 = vector.load %arg6[%c0_9, %c0_10] : memref<128x128xf32, #tpu.memory_space<vmem>>, vector<128x128xf32>
      %c0_11 = arith.constant 0 : index
      %c0_12 = arith.constant 0 : index
      %17 = vector.load %arg4[%c0_11, %c0_12] : memref<128x1xf32, #tpu.memory_space<vmem>>, vector<128x1xf32>
      %18 = vector.broadcast %17 : vector<128x1xf32> to vector<128x128xf32>
      %19 = arith.mulf %16, %18 : vector<128x128xf32>
      %cst_13 = arith.constant 0.000000e+00 : f32
      %20 = vector.broadcast %cst_13 : f32 to vector<128x128xf32>
      %21 = arith.maximumf %19, %20 : vector<128x128xf32>
      %22 = arith.truncf %21 : vector<128x128xf32> to vector<128x128xbf16>
      %c0_14 = arith.constant 0 : index
      %c0_15 = arith.constant 0 : index
      %23 = vector.load %arg5[%c0_14, %c0_15] : memref<128x128xbf16, #tpu.memory_space<vmem>>, vector<128x128xbf16>
      tpu.vector_store %arg5[%c0_14, %c0_15], %22 {strides = array<i32>} : memref<128x128xbf16, #tpu.memory_space<vmem>>, vector<128x128xbf16>,
    } else {
    }
    return
  }
  func.func @transform_0(%arg0: i32, %arg1: i32) -> (i32, i32) {
    %c0_i32 = arith.constant 0 : i32
    return %arg0, %arg1 : i32, i32
  }
  func.func @transform_1(%arg0: i32, %arg1: i32) -> (i32, i32) {
    %c0_i32 = arith.constant 0 : i32
    %c0_i32_0 = arith.constant 0 : i32
    %c0_i32_1 = arith.constant 0 : i32
    return %c0_i32, %c0_i32_0 : i32, i32
  }
  func.func @transform_2(%arg0: i32, %arg1: i32) -> (i32, i32) {
    %c0_i32 = arith.constant 0 : i32
    %c0_i32_0 = arith.constant 0 : i32
    return %arg0, %c0_i32 : i32, i32
  }
  func.func @transform_3(%arg0: i32, %arg1: i32) -> (i32, i32) {
    %c0_i32 = arith.constant 0 : i32
    %c0_i32_0 = arith.constant 0 : i32
    return %arg0, %c0_i32 : i32, i32
  }
}

module attributes {stable_mosaic.version = 11 : i64} {
  func.func @_agg_kernel(%arg0: i32, %arg1: i32, %arg2: memref<128x128xi8, #tpu.memory_space<vmem>>, %arg3: memref<128x128xbf16, #tpu.memory_space<vmem>>, %arg4: memref<128x1xf32, #tpu.memory_space<vmem>>, %arg5: memref<128x128xf32, #tpu.memory_space<vmem>>, %arg6: memref<128x128xf32, #tpu.memory_space<vmem>>) attributes {dimension_semantics = [#tpu.dimension_semantics<parallel>, #tpu.dimension_semantics<arbitrary>], iteration_bounds = array<i64: 1, 1>, scalar_prefetch = 0 : i64, scratch_operands = 1 : i64, tpu.core_type = #tpu.core_type<tc>, window_params = [{transform_indices = @transform_0, window_bounds = array<i64: 128, 128>}, {pipeline_mode = #tpu.pipeline_mode<synchronous>, transform_indices = @transform_1, window_bounds = array<i64: 128, 128>}, {transform_indices = @transform_2, window_bounds = array<i64: 128, 1>}, {transform_indices = @transform_3, window_bounds = array<i64: 128, 128>}]} {
    %c0_i32 = arith.constant 0 : i32
    %0 = arith.cmpi eq, %arg1, %c0_i32 : i32
    %1 = arith.extui %0 : i1 to i32
    %c0_i32_0 = arith.constant 0 : i32
    %2 = arith.cmpi ne, %1, %c0_i32_0 : i32
    scf.if %2 {
      %cst_9 = arith.constant 0.000000e+00 : f32
      %16 = vector.broadcast %cst_9 : f32 to vector<128x128xf32>
      %c0_10 = arith.constant 0 : index
      %c0_11 = arith.constant 0 : index
      %17 = vector.load %arg6[%c0_10, %c0_11] : memref<128x128xf32, #tpu.memory_space<vmem>>, vector<128x128xf32>
      tpu.vector_store %arg6[%c0_10, %c0_11], %16 {strides = array<i32>} : memref<128x128xf32, #tpu.memory_space<vmem>>, vector<128x128xf32>,
    } else {
    }
    %c128_i32 = arith.constant 128 : i32
    %3 = arith.muli %arg1, %c128_i32 : i32
    %4 = tpu.assume_multiple %3, 128 : i32
    %5 = arith.index_cast %4 : i32 to index
    %c0 = arith.constant 0 : index
    %6 = vector.load %arg3[%5, %c0] : memref<128x128xbf16, #tpu.memory_space<vmem>>, vector<128x128xbf16>
    %c0_1 = arith.constant 0 : index
    %c0_2 = arith.constant 0 : index
    %7 = vector.load %arg2[%c0_1, %c0_2] : memref<128x128xi8, #tpu.memory_space<vmem>>, vector<128x128xi8>
    %8 = arith.sitofp %7 : vector<128x128xi8> to vector<128x128xbf16>
    %c0_3 = arith.constant 0 : index
    %c0_4 = arith.constant 0 : index
    %9 = vector.load %arg6[%c0_3, %c0_4] : memref<128x128xf32, #tpu.memory_space<vmem>>, vector<128x128xf32>
    %cst = arith.constant dense<0.000000e+00> : vector<128x128xf32>
    %10 = tpu.matmul %8, %6, %cst {dimension_numbers = #tpu.dot_dimension_numbers<[1], [0], [0], [1], [0, 0, 1, 1], [], []>} : vector<128x128xbf16>, vector<128x128xbf16>, vector<128x128xf32> -> vector<128x128xf32>
    %11 = arith.addf %9, %10 : vector<128x128xf32>
    %c0_5 = arith.constant 0 : index
    %c0_6 = arith.constant 0 : index
    %12 = vector.load %arg6[%c0_5, %c0_6] : memref<128x128xf32, #tpu.memory_space<vmem>>, vector<128x128xf32>
    tpu.vector_store %arg6[%c0_5, %c0_6], %11 {strides = array<i32>} : memref<128x128xf32, #tpu.memory_space<vmem>>, vector<128x128xf32>,
    %c0_i32_7 = arith.constant 0 : i32
    %13 = arith.cmpi eq, %arg1, %c0_i32_7 : i32
    %14 = arith.extui %13 : i1 to i32
    %c0_i32_8 = arith.constant 0 : i32
    %15 = arith.cmpi ne, %14, %c0_i32_8 : i32
    scf.if %15 {
      %c0_9 = arith.constant 0 : index
      %c0_10 = arith.constant 0 : index
      %16 = vector.load %arg6[%c0_9, %c0_10] : memref<128x128xf32, #tpu.memory_space<vmem>>, vector<128x128xf32>
      %c0_11 = arith.constant 0 : index
      %c0_12 = arith.constant 0 : index
      %17 = vector.load %arg4[%c0_11, %c0_12] : memref<128x1xf32, #tpu.memory_space<vmem>>, vector<128x1xf32>
      %18 = vector.broadcast %17 : vector<128x1xf32> to vector<128x128xf32>
      %19 = arith.mulf %16, %18 : vector<128x128xf32>
      %c0_13 = arith.constant 0 : index
      %c0_14 = arith.constant 0 : index
      %20 = vector.load %arg5[%c0_13, %c0_14] : memref<128x128xf32, #tpu.memory_space<vmem>>, vector<128x128xf32>
      tpu.vector_store %arg5[%c0_13, %c0_14], %19 {strides = array<i32>} : memref<128x128xf32, #tpu.memory_space<vmem>>, vector<128x128xf32>,
    } else {
    }
    return
  }
  func.func @transform_0(%arg0: i32, %arg1: i32) -> (i32, i32) {
    %c0_i32 = arith.constant 0 : i32
    return %arg0, %arg1 : i32, i32
  }
  func.func @transform_1(%arg0: i32, %arg1: i32) -> (i32, i32) {
    %c0_i32 = arith.constant 0 : i32
    %c0_i32_0 = arith.constant 0 : i32
    %c0_i32_1 = arith.constant 0 : i32
    return %c0_i32, %c0_i32_0 : i32, i32
  }
  func.func @transform_2(%arg0: i32, %arg1: i32) -> (i32, i32) {
    %c0_i32 = arith.constant 0 : i32
    %c0_i32_0 = arith.constant 0 : i32
    return %arg0, %c0_i32 : i32, i32
  }
  func.func @transform_3(%arg0: i32, %arg1: i32) -> (i32, i32) {
    %c0_i32 = arith.constant 0 : i32
    %c0_i32_0 = arith.constant 0 : i32
    return %arg0, %c0_i32 : i32, i32
  }
}

</mosaic_0001>

<llo_original>
// kernel: sage_forward.5
$region0: #{sage_forward.5}
  #allocation0 [shape = 'u32[]', space=smem, size = 0x4, offset = 0x4, fixed_abs, tag = 'smem constant byte address 0x4 - core index']
  #allocation1 [shape = 'u32[144,128]{1,0:T(1,128)}', space=vmem, size = 0x12000, scoped, tag = 'internal scratch']
  #allocation2 [shape = 'f32[128,128]{1,0:T(8,128)}', space=vmem, size = 0x10000, scoped, tag = 'scratch operand']
  %s0 = inlined_call_operand.vmem [shape: s8[128,128], index: 0, kind: input, shape index: {}]
  %s1 = inlined_call_operand.vmem [shape: bf16[128,128], index: 1, kind: input, shape index: {}]
  %s2 = inlined_call_operand.vmem [shape: f32[128,1], index: 2, kind: input, shape index: {}]
  %s3 = inlined_call_operand.vmem [shape: bf16[128,128], index: 3, kind: output, shape index: {}]
  %s4 = sld [smem:[#allocation0]]
  $region30: #{sage_forward.5} parent=0
    _
  %s6 = ssub.s32 1, %s4
  %s7 = scalar_select 0, %s6, %s4
  // Predicated region
  $region2: #{sage_forward.5} parent=0 // pred_check
    _
  $region3: #{sage_forward.5} parent=0 // pred_check_branch
    %9 = sbr.rel (0) target = $region5
  $region4: #{sage_forward.5} parent=0 // pred_region
    _
  $region5: #{sage_forward.5} parent=0 // pred_fallthru
    _
  // Predicated region
  $region6: #{sage_forward.5} parent=0 // pred_check
    _
  $region7: #{sage_forward.5} parent=0 // pred_check_branch
    %11 = sbr.rel (0) target = $region9
  $region8: #{sage_forward.5} parent=0 // pred_region
    _
  $region9: #{sage_forward.5} parent=0 // pred_fallthru
    _
  // Predicated region
  $region10: #{sage_forward.5} parent=0 // pred_check
    _
  $region11: #{sage_forward.5} parent=0 // pred_check_branch
    %13 = sbr.rel (0) target = $region13
  $region12: #{sage_forward.5} parent=0 // pred_region
    _
  $region13: #{sage_forward.5} parent=0 // pred_fallthru
    _
  %p15 = scmp.eq.s32.totalorder 0, 0
  // Predicated region
  $region14: #{sage_forward.5} parent=0 // pred_check
    %p16 = pneg %p15
  $region15: #{sage_forward.5} parent=0 // pred_check_branch
    %18 = sbr.rel (%p16) target = $region17
  $region16: #{sage_forward.5} parent=0 // pred_region
    %19 = vst [vmem:[#allocation2] sm:$0xff] 0.0
    %20 = vst [vmem:[#allocation2 + $0x8] sm:$0xff] 0.0
    %21 = vst [vmem:[#allocation2 + $0x10] sm:$0xff] 0.0
    %22 = vst [vmem:[#allocation2 + $0x18] sm:$0xff] 0.0
    %23 = vst [vmem:[#allocation2 + $0x20] sm:$0xff] 0.0
    %24 = vst [vmem:[#allocation2 + $0x28] sm:$0xff] 0.0
    %25 = vst [vmem:[#allocation2 + $0x30] sm:$0xff] 0.0
    %26 = vst [vmem:[#allocation2 + $0x38] sm:$0xff] 0.0
    %27 = vst [vmem:[#allocation2 + $0x40] sm:$0xff] 0.0
    %28 = vst [vmem:[#allocation2 + $0x48] sm:$0xff] 0.0
    %29 = vst [vmem:[#allocation2 + $0x50] sm:$0xff] 0.0
    %30 = vst [vmem:[#allocation2 + $0x58] sm:$0xff] 0.0
    %31 = vst [vmem:[#allocation2 + $0x60] sm:$0xff] 0.0
    %32 = vst [vmem:[#allocation2 + $0x68] sm:$0xff] 0.0
    %33 = vst [vmem:[#allocation2 + $0x70] sm:$0xff] 0.0
    %34 = vst [vmem:[#allocation2 + $0x78] sm:$0xff] 0.0
  $region17: #{sage_forward.5} parent=0 // pred_fallthru
    _
  %s35 = smul.u32 0, 128
  %s36 = sshra.s32 %s35, 3
  %s37 = sand.u32 %s35, 7
  %s38 = smul.addr %s36, 4
  %s39 = scalar_lea.vmem %s1, %s38
  %v40 = vld [vmem:[%s39] sm:$0xf]
  %v41 = vld [vmem:[%s39 + $0x4] sm:$0xf]
  %v42 = vld [vmem:[%s39 + $0x8] sm:$0xf]
  %v43 = vld [vmem:[%s39 + $0xc] sm:$0xf]
  %v44 = vld [vmem:[%s39 + $0x10] sm:$0xf]
  %v45 = vld [vmem:[%s39 + $0x14] sm:$0xf]
  %v46 = vld [vmem:[%s39 + $0x18] sm:$0xf]
  %v47 = vld [vmem:[%s39 + $0x1c] sm:$0xf]
  %v48 = vld [vmem:[%s39 + $0x20] sm:$0xf]
  %v49 = vld [vmem:[%s39 + $0x24] sm:$0xf]
  %v50 = vld [vmem:[%s39 + $0x28] sm:$0xf]
  %v51 = vld [vmem:[%s39 + $0x2c] sm:$0xf]
  %v52 = vld [vmem:[%s39 + $0x30] sm:$0xf]
  %v53 = vld [vmem:[%s39 + $0x34] sm:$0xf]
  %v54 = vld [vmem:[%s39 + $0x38] sm:$0xf]
  %v55 = vld [vmem:[%s39 + $0x3c] sm:$0xf]
  %v56 = vld [vmem:[%s0] sm:$0xff]
  %v57 = vld [vmem:[%s0 + $0x8] sm:$0xff]
  %v58 = vld [vmem:[%s0 + $0x10] sm:$0xff]
  %v59 = vld [vmem:[%s0 + $0x18] sm:$0xff]
  %v60 = vunpack.c.l.s8.bf16 %v56
  %v61 = vunpack.c.h.s8.bf16 %v56
  %v62 = vunpack.c.l.s8.bf16 %v57
  %v63 = vunpack.c.h.s8.bf16 %v57
  %v64 = vunpack.c.l.s8.bf16 %v58
  %v65 = vunpack.c.h.s8.bf16 %v58
  %v66 = vunpack.c.l.s8.bf16 %v59
  %v67 = vunpack.c.h.s8.bf16 %v59
  %v68 = vld [vmem:[#allocation2] sm:$0xff]
  %v69 = vld [vmem:[#allocation2 + $0x8] sm:$0xff]
  %v70 = vld [vmem:[#allocation2 + $0x10] sm:$0xff]
  %v71 = vld [vmem:[#allocation2 + $0x18] sm:$0xff]
  %v72 = vld [vmem:[#allocation2 + $0x20] sm:$0xff]
  %v73 = vld [vmem:[#allocation2 + $0x28] sm:$0xff]
  %v74 = vld [vmem:[#allocation2 + $0x30] sm:$0xff]
  %v75 = vld [vmem:[#allocation2 + $0x38] sm:$0xff]
  %v76 = vld [vmem:[#allocation2 + $0x40] sm:$0xff]
  %v77 = vld [vmem:[#allocation2 + $0x48] sm:$0xff]
  %v78 = vld [vmem:[#allocation2 + $0x50] sm:$0xff]
  %v79 = vld [vmem:[#allocation2 + $0x58] sm:$0xff]
  %v80 = vld [vmem:[#allocation2 + $0x60] sm:$0xff]
  %v81 = vld [vmem:[#allocation2 + $0x68] sm:$0xff]
  %v82 = vld [vmem:[#allocation2 + $0x70] sm:$0xff]
  %v83 = vld [vmem:[#allocation2 + $0x78] sm:$0xff]
  %v100 = vunpack.c.l.b16 %v40
  %v101 = vunpack.c.l.b16 %v41
  %v102 = vunpack.c.l.b16 %v42
  %v103 = vunpack.c.l.b16 %v43
  %v104 = vunpack.c.l.b16 %v44
  %v105 = vunpack.c.l.b16 %v45
  %v106 = vunpack.c.l.b16 %v46
  %v107 = vunpack.c.l.b16 %v47
  %v108 = vunpack.c.l.b16 %v48
  %v109 = vunpack.c.l.b16 %v49
  %v110 = vunpack.c.l.b16 %v50
  %v111 = vunpack.c.l.b16 %v51
  %v112 = vunpack.c.l.b16 %v52
  %v113 = vunpack.c.l.b16 %v53
  %v114 = vunpack.c.l.b16 %v54
  %v115 = vunpack.c.l.b16 %v55
  %v116 = vpack.c.b16 %v101, %v100
  %v117 = vpack.c.b16 %v103, %v102
  %v118 = vpack.c.b16 %v105, %v104
  %v119 = vpack.c.b16 %v107, %v106
  %v120 = vpack.c.b16 %v109, %v108
  %v121 = vpack.c.b16 %v111, %v110
  %v122 = vpack.c.b16 %v113, %v112
  %v123 = vpack.c.b16 %v115, %v114
  %132 = vmatprep.subr.bf16.mxu0 0
  %133 = vmatpush1.bf16.msra.mxu0 %v116
  %134 = vmatprep.subr.bf16.mxu0 0
  %135 = vmatpush1.bf16.msra.mxu0 %v117
  %136 = vmatprep.subr.bf16.mxu0 0
  %137 = vmatpush1.bf16.msra.mxu0 %v118
  %138 = vmatprep.subr.bf16.mxu0 0
  %139 = vmatpush1.bf16.msra.mxu0 %v119
  %140 = vmatprep.subr.bf16.mxu0 0
  %141 = vmatpush1.bf16.msra.mxu0 %v120
  %142 = vmatprep.subr.bf16.mxu0 0
  %143 = vmatpush1.bf16.msra.mxu0 %v121
  %144 = vmatprep.subr.bf16.mxu0 0
  %145 = vmatpush1.bf16.msra.mxu0 %v122
  %146 = vmatprep.subr.bf16.mxu0 0
  %147 = vmatpush1.bf16.msra.mxu0 %v123
  %148 = vmatprep.subr.bf16.mxu0 0
  %149 = vmatpush1.bf16.msra.mxu0 0
  %150 = vmatprep.subr.bf16.mxu0 0
  %151 = vmatpush1.bf16.msra.mxu0 0
  %152 = vmatprep.subr.bf16.mxu0 0
  %153 = vmatpush1.bf16.msra.mxu0 0
  %154 = vmatprep.subr.bf16.mxu0 0
  %155 = vmatpush1.bf16.msra.mxu0 0
  %156 = vmatprep.subr.bf16.mxu0 0
  %157 = vmatpush1.bf16.msra.mxu0 0
  %158 = vmatprep.subr.bf16.mxu0 0
  %159 = vmatpush1.bf16.msra.mxu0 0
  %160 = vmatprep.subr.bf16.mxu0 0
  %161 = vmatpush1.bf16.msra.mxu0 0
  %162 = vmatprep.subr.bf16.mxu0 0
  %163 = vmatpush1.bf16.msra.mxu0 0
  %164 = vmatprep.mubr.bf16.mxu0 0
  %165 = vmatmul.mubr.bf16.gmra.mrb[0].mxu0 %v60
  %v166 = vpop.f32.mrb[0].mxu0
  %v167 = vadd.f32 0.0, %v166
  %v168 = vpop.f32.mrb[0].mxu0
  %v169 = vpop.f32.mrb[0].mxu0
  %v170 = vadd.f32 0.0, %v169
  %v171 = vpop.f32.mrb[0].mxu0
  %172 = vmatprep.mubr.bf16.mxu0 0
  %173 = vmatmul.mubr.bf16.gmra.mrb[0].mxu0 %v61
  %v174 = vpop.f32.mrb[0].mxu0
  %v175 = vadd.f32 0.0, %v174
  %v176 = vpop.f32.mrb[0].mxu0
  %v177 = vpop.f32.mrb[0].mxu0
  %v178 = vadd.f32 0.0, %v177
  %v179 = vpop.f32.mrb[0].mxu0
  %180 = vmatprep.mubr.bf16.mxu0 0
  %181 = vmatmul.mubr.bf16.gmra.mrb[0].mxu0 %v62
  %v182 = vpop.f32.mrb[0].mxu0
  %v183 = vadd.f32 0.0, %v182
  %v184 = vpop.f32.mrb[0].mxu0
  %v185 = vpop.f32.mrb[0].mxu0
  %v186 = vadd.f32 0.0, %v185
  %v187 = vpop.f32.mrb[0].mxu0
  %188 = vmatprep.mubr.bf16.mxu0 0
  %189 = vmatmul.mubr.bf16.gmra.mrb[0].mxu0 %v63
  %v190 = vpop.f32.mrb[0].mxu0
  %v191 = vadd.f32 0.0, %v190
  %v192 = vpop.f32.mrb[0].mxu0
  %v193 = vpop.f32.mrb[0].mxu0
  %v194 = vadd.f32 0.0, %v193
  %v195 = vpop.f32.mrb[0].mxu0
  %196 = vmatprep.mubr.bf16.mxu0 0
  %197 = vmatmul.mubr.bf16.gmra.mrb[0].mxu0 %v64
  %v198 = vpop.f32.mrb[0].mxu0
  %v199 = vadd.f32 0.0, %v198
  %v200 = vpop.f32.mrb[0].mxu0
  %v201 = vpop.f32.mrb[0].mxu0
  %v202 = vadd.f32 0.0, %v201
  %v203 = vpop.f32.mrb[0].mxu0
  %204 = vmatprep.mubr.bf16.mxu0 0
  %205 = vmatmul.mubr.bf16.gmra.mrb[0].mxu0 %v65
  %v206 = vpop.f32.mrb[0].mxu0
  %v207 = vadd.f32 0.0, %v206
  %v208 = vpop.f32.mrb[0].mxu0
  %v209 = vpop.f32.mrb[0].mxu0
  %v210 = vadd.f32 0.0, %v209
  %v211 = vpop.f32.mrb[0].mxu0
  %212 = vmatprep.mubr.bf16.mxu0 0
  %213 = vmatmul.mubr.bf16.gmra.mrb[0].mxu0 %v66
  %v214 = vpop.f32.mrb[0].mxu0
  %v215 = vadd.f32 0.0, %v214
  %v216 = vpop.f32.mrb[0].mxu0
  %v217 = vpop.f32.mrb[0].mxu0
  %v218 = vadd.f32 0.0, %v217
  %v219 = vpop.f32.mrb[0].mxu0
  %220 = vmatprep.mubr.bf16.mxu0 0
  %221 = vmatmul.mubr.bf16.gmra.mrb[0].mxu0 %v67
  %v222 = vpop.f32.mrb[0].mxu0
  %v223 = vadd.f32 0.0, %v222
  %v224 = vpop.f32.mrb[0].mxu0
  %v225 = vpop.f32.mrb[0].mxu0
  %v226 = vadd.f32 0.0, %v225
  %v227 = vpop.f32.mrb[0].mxu0
  %228 = vdwg.mxu0
  %v229 = vadd.f32 %v68, %v167
  %v230 = vadd.f32 %v69, %v170
  %v231 = vadd.f32 %v70, %v175
  %v232 = vadd.f32 %v71, %v178
  %v233 = vadd.f32 %v72, %v183
  %v234 = vadd.f32 %v73, %v186
  %v235 = vadd.f32 %v74, %v191
  %v236 = vadd.f32 %v75, %v194
  %v237 = vadd.f32 %v76, %v199
  %v238 = vadd.f32 %v77, %v202
  %v239 = vadd.f32 %v78, %v207
  %v240 = vadd.f32 %v79, %v210
  %v241 = vadd.f32 %v80, %v215
  %v242 = vadd.f32 %v81, %v218
  %v243 = vadd.f32 %v82, %v223
  %v244 = vadd.f32 %v83, %v226
  %245 = vst [vmem:[#allocation2] sm:$0xff] %v229
  %246 = vst [vmem:[#allocation2 + $0x8] sm:$0xff] %v230
  %247 = vst [vmem:[#allocation2 + $0x10] sm:$0xff] %v231
  %248 = vst [vmem:[#allocation2 + $0x18] sm:$0xff] %v232
  %249 = vst [vmem:[#allocation2 + $0x20] sm:$0xff] %v233
  %250 = vst [vmem:[#allocation2 + $0x28] sm:$0xff] %v234
  %251 = vst [vmem:[#allocation2 + $0x30] sm:$0xff] %v235
  %252 = vst [vmem:[#allocation2 + $0x38] sm:$0xff] %v236
  %253 = vst [vmem:[#allocation2 + $0x40] sm:$0xff] %v237
  %254 = vst [vmem:[#allocation2 + $0x48] sm:$0xff] %v238
  %255 = vst [vmem:[#allocation2 + $0x50] sm:$0xff] %v239
  %256 = vst [vmem:[#allocation2 + $0x58] sm:$0xff] %v240
  %257 = vst [vmem:[#allocation2 + $0x60] sm:$0xff] %v241
  %258 = vst [vmem:[#allocation2 + $0x68] sm:$0xff] %v242
  %259 = vst [vmem:[#allocation2 + $0x70] sm:$0xff] %v243
  %260 = vst [vmem:[#allocation2 + $0x78] sm:$0xff] %v244
  // Predicated region
  $region18: #{sage_forward.5} parent=0 // pred_check
    %p261 = pneg %p15
  $region19: #{sage_forward.5} parent=0 // pred_check_branch
    %263 = sbr.rel (%p261) target = $region21
  $region20: #{sage_forward.5} parent=0 // pred_region
    %v264 = vld [vmem:[#allocation2] sm:$0xff]
    %v265 = vld [vmem:[#allocation2 + $0x8] sm:$0xff]
    %v266 = vld [vmem:[#allocation2 + $0x10] sm:$0xff]
    %v267 = vld [vmem:[#allocation2 + $0x18] sm:$0xff]
    %v268 = vld [vmem:[#allocation2 + $0x20] sm:$0xff]
    %v269 = vld [vmem:[#allocation2 + $0x28] sm:$0xff]
    %v270 = vld [vmem:[#allocation2 + $0x30] sm:$0xff]
    %v271 = vld [vmem:[#allocation2 + $0x38] sm:$0xff]
    %v272 = vld [vmem:[#allocation2 + $0x40] sm:$0xff]
    %v273 = vld [vmem:[#allocation2 + $0x48] sm:$0xff]
    %v274 = vld [vmem:[#allocation2 + $0x50] sm:$0xff]
    %v275 = vld [vmem:[#allocation2 + $0x58] sm:$0xff]
    %v276 = vld [vmem:[#allocation2 + $0x60] sm:$0xff]
    %v277 = vld [vmem:[#allocation2 + $0x68] sm:$0xff]
    %v278 = vld [vmem:[#allocation2 + $0x70] sm:$0xff]
    %v279 = vld [vmem:[#allocation2 + $0x78] sm:$0xff]
    %v280 = vld [vmem:[%s2] sm:$0xff]
    %v281 = vld [vmem:[%s2 + $0x8] sm:$0xff]
    %v282 = vld [vmem:[%s2 + $0x10] sm:$0xff]
    %v283 = vld [vmem:[%s2 + $0x18] sm:$0xff]
    %v284 = vld [vmem:[%s2 + $0x20] sm:$0xff]
    %v285 = vld [vmem:[%s2 + $0x28] sm:$0xff]
    %v286 = vld [vmem:[%s2 + $0x30] sm:$0xff]
    %v287 = vld [vmem:[%s2 + $0x38] sm:$0xff]
    %v288 = vld [vmem:[%s2 + $0x40] sm:$0xff]
    %v289 = vld [vmem:[%s2 + $0x48] sm:$0xff]
    %v290 = vld [vmem:[%s2 + $0x50] sm:$0xff]
    %v291 = vld [vmem:[%s2 + $0x58] sm:$0xff]
    %v292 = vld [vmem:[%s2 + $0x60] sm:$0xff]
    %v293 = vld [vmem:[%s2 + $0x68] sm:$0xff]
    %v294 = vld [vmem:[%s2 + $0x70] sm:$0xff]
    %v295 = vld [vmem:[%s2 + $0x78] sm:$0xff]
    %297 = vset.pattern.permute.xlu0 0
    %298 = vperm.xlu0 %297, %v280
    %v299 = vpop.permute.xlu0 %298
    %302 = vset.pattern.permute.xlu0 0
    %303 = vperm.xlu0 %302, %v281
    %v304 = vpop.permute.xlu0 %303
    %307 = vset.pattern.permute.xlu0 0
    %308 = vperm.xlu0 %307, %v282
    %v309 = vpop.permute.xlu0 %308
    %312 = vset.pattern.permute.xlu0 0
    %313 = vperm.xlu0 %312, %v283
    %v314 = vpop.permute.xlu0 %313
    %317 = vset.pattern.permute.xlu0 0
    %318 = vperm.xlu0 %317, %v284
    %v319 = vpop.permute.xlu0 %318
    %322 = vset.pattern.permute.xlu0 0
    %323 = vperm.xlu0 %322, %v285
    %v324 = vpop.permute.xlu0 %323
    %327 = vset.pattern.permute.xlu0 0
    %328 = vperm.xlu0 %327, %v286
    %v329 = vpop.permute.xlu0 %328
    %332 = vset.pattern.permute.xlu0 0
    %333 = vperm.xlu0 %332, %v287
    %v334 = vpop.permute.xlu0 %333
    %337 = vset.pattern.permute.xlu0 0
    %338 = vperm.xlu0 %337, %v288
    %v339 = vpop.permute.xlu0 %338
    %342 = vset.pattern.permute.xlu0 0
    %343 = vperm.xlu0 %342, %v289
    %v344 = vpop.permute.xlu0 %343
    %347 = vset.pattern.permute.xlu0 0
    %348 = vperm.xlu0 %347, %v290
    %v349 = vpop.permute.xlu0 %348
    %352 = vset.pattern.permute.xlu0 0
    %353 = vperm.xlu0 %352, %v291
    %v354 = vpop.permute.xlu0 %353
    %357 = vset.pattern.permute.xlu0 0
    %358 = vperm.xlu0 %357, %v292
    %v359 = vpop.permute.xlu0 %358
    %362 = vset.pattern.permute.xlu0 0
    %363 = vperm.xlu0 %362, %v293
    %v364 = vpop.permute.xlu0 %363
    %367 = vset.pattern.permute.xlu0 0
    %368 = vperm.xlu0 %367, %v294
    %v369 = vpop.permute.xlu0 %368
    %372 = vset.pattern.permute.xlu0 0
    %373 = vperm.xlu0 %372, %v295
    %v374 = vpop.permute.xlu0 %373
    %v376 = vmul.f32 %v264, %v299
    %v377 = vmul.f32 %v265, %v304
    %v378 = vmul.f32 %v266, %v309
    %v379 = vmul.f32 %v267, %v314
    %v380 = vmul.f32 %v268, %v319
    %v381 = vmul.f32 %v269, %v324
    %v382 = vmul.f32 %v270, %v329
    %v383 = vmul.f32 %v271, %v334
    %v384 = vmul.f32 %v272, %v339
    %v385 = vmul.f32 %v273, %v344
    %v386 = vmul.f32 %v274, %v349
    %v387 = vmul.f32 %v275, %v354
    %v388 = vmul.f32 %v276, %v359
    %v389 = vmul.f32 %v277, %v364
    %v390 = vmul.f32 %v278, %v369
    %v391 = vmul.f32 %v279, %v374
    %v392 = vmax.f32 %v376, 0.0
    %v393 = vmax.f32 %v377, 0.0
    %v394 = vmax.f32 %v378, 0.0
    %v395 = vmax.f32 %v379, 0.0
    %v396 = vmax.f32 %v380, 0.0
    %v397 = vmax.f32 %v381, 0.0
    %v398 = vmax.f32 %v382, 0.0
    %v399 = vmax.f32 %v383, 0.0
    %v400 = vmax.f32 %v384, 0.0
    %v401 = vmax.f32 %v385, 0.0
    %v402 = vmax.f32 %v386, 0.0
    %v403 = vmax.f32 %v387, 0.0
    %v404 = vmax.f32 %v388, 0.0
    %v405 = vmax.f32 %v389, 0.0
    %v406 = vmax.f32 %v390, 0.0
    %v407 = vmax.f32 %v391, 0.0
    %v408 = vpack.c.bf16 %v393, %v392
    %v409 = vpack.c.bf16 %v395, %v394
    %v410 = vpack.c.bf16 %v397, %v396
    %v411 = vpack.c.bf16 %v399, %v398
    %v412 = vpack.c.bf16 %v401, %v400
    %v413 = vpack.c.bf16 %v403, %v402
    %v414 = vpack.c.bf16 %v405, %v404
    %v415 = vpack.c.bf16 %v407, %v406
    %v424 = vunpack.c.l.b16 %v408
    %v425 = vunpack.c.h.b16 %v408
    %v426 = vunpack.c.l.b16 %v409
    %v427 = vunpack.c.h.b16 %v409
    %v428 = vunpack.c.l.b16 %v410
    %v429 = vunpack.c.h.b16 %v410
    %v430 = vunpack.c.l.b16 %v411
    %v431 = vunpack.c.h.b16 %v411
    %v432 = vunpack.c.l.b16 %v412
    %v433 = vunpack.c.h.b16 %v412
    %v434 = vunpack.c.l.b16 %v413
    %v435 = vunpack.c.h.b16 %v413
    %v436 = vunpack.c.l.b16 %v414
    %v437 = vunpack.c.h.b16 %v414
    %v438 = vunpack.c.l.b16 %v415
    %v439 = vunpack.c.h.b16 %v415
    %v440 = vpack.c.b16 %v424, %v424
    %v441 = vpack.c.b16 %v425, %v425
    %v442 = vpack.c.b16 %v426, %v426
    %v443 = vpack.c.b16 %v427, %v427
    %v444 = vpack.c.b16 %v428, %v428
    %v445 = vpack.c.b16 %v429, %v429
    %v446 = vpack.c.b16 %v430, %v430
    %v447 = vpack.c.b16 %v431, %v431
    %v448 = vpack.c.b16 %v432, %v432
    %v449 = vpack.c.b16 %v433, %v433
    %v450 = vpack.c.b16 %v434, %v434
    %v451 = vpack.c.b16 %v435, %v435
    %v452 = vpack.c.b16 %v436, %v436
    %v453 = vpack.c.b16 %v437, %v437
    %v454 = vpack.c.b16 %v438, %v438
    %v455 = vpack.c.b16 %v439, %v439
    %472 = vst [vmem:[%s3] sm:$0xf] %v440
    %473 = vst [vmem:[%s3 + $0x4] sm:$0xf] %v441
    %474 = vst [vmem:[%s3 + $0x8] sm:$0xf] %v442
    %475 = vst [vmem:[%s3 + $0xc] sm:$0xf] %v443
    %476 = vst [vmem:[%s3 + $0x10] sm:$0xf] %v444
    %477 = vst [vmem:[%s3 + $0x14] sm:$0xf] %v445
    %478 = vst [vmem:[%s3 + $0x18] sm:$0xf] %v446
    %479 = vst [vmem:[%s3 + $0x1c] sm:$0xf] %v447
    %480 = vst [vmem:[%s3 + $0x20] sm:$0xf] %v448
    %481 = vst [vmem:[%s3 + $0x24] sm:$0xf] %v449
    %482 = vst [vmem:[%s3 + $0x28] sm:$0xf] %v450
    %483 = vst [vmem:[%s3 + $0x2c] sm:$0xf] %v451
    %484 = vst [vmem:[%s3 + $0x30] sm:$0xf] %v452
    %485 = vst [vmem:[%s3 + $0x34] sm:$0xf] %v453
    %486 = vst [vmem:[%s3 + $0x38] sm:$0xf] %v454
    %487 = vst [vmem:[%s3 + $0x3c] sm:$0xf] %v455
  $region21: #{sage_forward.5} parent=0 // pred_fallthru
    _
  // Predicated region
  $region22: #{sage_forward.5} parent=0 // pred_check
    _
  $region23: #{sage_forward.5} parent=0 // pred_check_branch
    %489 = sbr.rel (0) target = $region25
  $region24: #{sage_forward.5} parent=0 // pred_region
    _
  $region25: #{sage_forward.5} parent=0 // pred_fallthru
    _
  // Predicated region
  $region26: #{sage_forward.5} parent=0 // pred_check
    _
  $region27: #{sage_forward.5} parent=0 // pred_check_branch
    %491 = sbr.rel (0) target = $region29
  $region28: #{sage_forward.5} parent=0 // pred_region
    _
  $region29: #{sage_forward.5} parent=0 // pred_fallthru
    _

// kernel: sage_forward.7
$region0: #{sage_forward.7}
  #allocation0 [shape = 'u32[]', space=smem, size = 0x4, offset = 0x4, fixed_abs, tag = 'smem constant byte address 0x4 - core index']
  #allocation1 [shape = 'u32[144,128]{1,0:T(1,128)}', space=vmem, size = 0x12000, scoped, tag = 'internal scratch']
  #allocation2 [shape = 'f32[128,128]{1,0:T(8,128)}', space=vmem, size = 0x10000, scoped, tag = 'scratch operand']
  %s0 = inlined_call_operand.vmem [shape: s8[128,128], index: 0, kind: input, shape index: {}]
  %s1 = inlined_call_operand.vmem [shape: bf16[128,128], index: 1, kind: input, shape index: {}]
  %s2 = inlined_call_operand.vmem [shape: f32[128,1], index: 2, kind: input, shape index: {}]
  %s3 = inlined_call_operand.vmem [shape: f32[128,128], index: 3, kind: output, shape index: {}]
  %s4 = sld [smem:[#allocation0]]
  $region30: #{sage_forward.7} parent=0
    _
  %s6 = ssub.s32 1, %s4
  %s7 = scalar_select 0, %s6, %s4
  // Predicated region
  $region2: #{sage_forward.7} parent=0 // pred_check
    _
  $region3: #{sage_forward.7} parent=0 // pred_check_branch
    %9 = sbr.rel (0) target = $region5
  $region4: #{sage_forward.7} parent=0 // pred_region
    _
  $region5: #{sage_forward.7} parent=0 // pred_fallthru
    _
  // Predicated region
  $region6: #{sage_forward.7} parent=0 // pred_check
    _
  $region7: #{sage_forward.7} parent=0 // pred_check_branch
    %11 = sbr.rel (0) target = $region9
  $region8: #{sage_forward.7} parent=0 // pred_region
    _
  $region9: #{sage_forward.7} parent=0 // pred_fallthru
    _
  // Predicated region
  $region10: #{sage_forward.7} parent=0 // pred_check
    _
  $region11: #{sage_forward.7} parent=0 // pred_check_branch
    %13 = sbr.rel (0) target = $region13
  $region12: #{sage_forward.7} parent=0 // pred_region
    _
  $region13: #{sage_forward.7} parent=0 // pred_fallthru
    _
  %p15 = scmp.eq.s32.totalorder 0, 0
  // Predicated region
  $region14: #{sage_forward.7} parent=0 // pred_check
    %p16 = pneg %p15
  $region15: #{sage_forward.7} parent=0 // pred_check_branch
    %18 = sbr.rel (%p16) target = $region17
  $region16: #{sage_forward.7} parent=0 // pred_region
    %19 = vst [vmem:[#allocation2] sm:$0xff] 0.0
    %20 = vst [vmem:[#allocation2 + $0x8] sm:$0xff] 0.0
    %21 = vst [vmem:[#allocation2 + $0x10] sm:$0xff] 0.0
    %22 = vst [vmem:[#allocation2 + $0x18] sm:$0xff] 0.0
    %23 = vst [vmem:[#allocation2 + $0x20] sm:$0xff] 0.0
    %24 = vst [vmem:[#allocation2 + $0x28] sm:$0xff] 0.0
    %25 = vst [vmem:[#allocation2 + $0x30] sm:$0xff] 0.0
    %26 = vst [vmem:[#allocation2 + $0x38] sm:$0xff] 0.0
    %27 = vst [vmem:[#allocation2 + $0x40] sm:$0xff] 0.0
    %28 = vst [vmem:[#allocation2 + $0x48] sm:$0xff] 0.0
    %29 = vst [vmem:[#allocation2 + $0x50] sm:$0xff] 0.0
    %30 = vst [vmem:[#allocation2 + $0x58] sm:$0xff] 0.0
    %31 = vst [vmem:[#allocation2 + $0x60] sm:$0xff] 0.0
    %32 = vst [vmem:[#allocation2 + $0x68] sm:$0xff] 0.0
    %33 = vst [vmem:[#allocation2 + $0x70] sm:$0xff] 0.0
    %34 = vst [vmem:[#allocation2 + $0x78] sm:$0xff] 0.0
  $region17: #{sage_forward.7} parent=0 // pred_fallthru
    _
  %s35 = smul.u32 0, 128
  %s36 = sshra.s32 %s35, 3
  %s37 = sand.u32 %s35, 7
  %s38 = smul.addr %s36, 4
  %s39 = scalar_lea.vmem %s1, %s38
  %v40 = vld [vmem:[%s39] sm:$0xf]
  %v41 = vld [vmem:[%s39 + $0x4] sm:$0xf]
  %v42 = vld [vmem:[%s39 + $0x8] sm:$0xf]
  %v43 = vld [vmem:[%s39 + $0xc] sm:$0xf]
  %v44 = vld [vmem:[%s39 + $0x10] sm:$0xf]
  %v45 = vld [vmem:[%s39 + $0x14] sm:$0xf]
  %v46 = vld [vmem:[%s39 + $0x18] sm:$0xf]
  %v47 = vld [vmem:[%s39 + $0x1c] sm:$0xf]
  %v48 = vld [vmem:[%s39 + $0x20] sm:$0xf]
  %v49 = vld [vmem:[%s39 + $0x24] sm:$0xf]
  %v50 = vld [vmem:[%s39 + $0x28] sm:$0xf]
  %v51 = vld [vmem:[%s39 + $0x2c] sm:$0xf]
  %v52 = vld [vmem:[%s39 + $0x30] sm:$0xf]
  %v53 = vld [vmem:[%s39 + $0x34] sm:$0xf]
  %v54 = vld [vmem:[%s39 + $0x38] sm:$0xf]
  %v55 = vld [vmem:[%s39 + $0x3c] sm:$0xf]
  %v56 = vld [vmem:[%s0] sm:$0xff]
  %v57 = vld [vmem:[%s0 + $0x8] sm:$0xff]
  %v58 = vld [vmem:[%s0 + $0x10] sm:$0xff]
  %v59 = vld [vmem:[%s0 + $0x18] sm:$0xff]
  %v60 = vunpack.c.l.s8.bf16 %v56
  %v61 = vunpack.c.h.s8.bf16 %v56
  %v62 = vunpack.c.l.s8.bf16 %v57
  %v63 = vunpack.c.h.s8.bf16 %v57
  %v64 = vunpack.c.l.s8.bf16 %v58
  %v65 = vunpack.c.h.s8.bf16 %v58
  %v66 = vunpack.c.l.s8.bf16 %v59
  %v67 = vunpack.c.h.s8.bf16 %v59
  %v68 = vld [vmem:[#allocation2] sm:$0xff]
  %v69 = vld [vmem:[#allocation2 + $0x8] sm:$0xff]
  %v70 = vld [vmem:[#allocation2 + $0x10] sm:$0xff]
  %v71 = vld [vmem:[#allocation2 + $0x18] sm:$0xff]
  %v72 = vld [vmem:[#allocation2 + $0x20] sm:$0xff]
  %v73 = vld [vmem:[#allocation2 + $0x28] sm:$0xff]
  %v74 = vld [vmem:[#allocation2 + $0x30] sm:$0xff]
  %v75 = vld [vmem:[#allocation2 + $0x38] sm:$0xff]
  %v76 = vld [vmem:[#allocation2 + $0x40] sm:$0xff]
  %v77 = vld [vmem:[#allocation2 + $0x48] sm:$0xff]
  %v78 = vld [vmem:[#allocation2 + $0x50] sm:$0xff]
  %v79 = vld [vmem:[#allocation2 + $0x58] sm:$0xff]
  %v80 = vld [vmem:[#allocation2 + $0x60] sm:$0xff]
  %v81 = vld [vmem:[#allocation2 + $0x68] sm:$0xff]
  %v82 = vld [vmem:[#allocation2 + $0x70] sm:$0xff]
  %v83 = vld [vmem:[#allocation2 + $0x78] sm:$0xff]
  %v100 = vunpack.c.l.b16 %v40
  %v101 = vunpack.c.l.b16 %v41
  %v102 = vunpack.c.l.b16 %v42
  %v103 = vunpack.c.l.b16 %v43
  %v104 = vunpack.c.l.b16 %v44
  %v105 = vunpack.c.l.b16 %v45
  %v106 = vunpack.c.l.b16 %v46
  %v107 = vunpack.c.l.b16 %v47
  %v108 = vunpack.c.l.b16 %v48
  %v109 = vunpack.c.l.b16 %v49
  %v110 = vunpack.c.l.b16 %v50
  %v111 = vunpack.c.l.b16 %v51
  %v112 = vunpack.c.l.b16 %v52
  %v113 = vunpack.c.l.b16 %v53
  %v114 = vunpack.c.l.b16 %v54
  %v115 = vunpack.c.l.b16 %v55
  %v116 = vpack.c.b16 %v101, %v100
  %v117 = vpack.c.b16 %v103, %v102
  %v118 = vpack.c.b16 %v105, %v104
  %v119 = vpack.c.b16 %v107, %v106
  %v120 = vpack.c.b16 %v109, %v108
  %v121 = vpack.c.b16 %v111, %v110
  %v122 = vpack.c.b16 %v113, %v112
  %v123 = vpack.c.b16 %v115, %v114
  %132 = vmatprep.subr.bf16.mxu0 0
  %133 = vmatpush1.bf16.msra.mxu0 %v116
  %134 = vmatprep.subr.bf16.mxu0 0
  %135 = vmatpush1.bf16.msra.mxu0 %v117
  %136 = vmatprep.subr.bf16.mxu0 0
  %137 = vmatpush1.bf16.msra.mxu0 %v118
  %138 = vmatprep.subr.bf16.mxu0 0
  %139 = vmatpush1.bf16.msra.mxu0 %v119
  %140 = vmatprep.subr.bf16.mxu0 0
  %141 = vmatpush1.bf16.msra.mxu0 %v120
  %142 = vmatprep.subr.bf16.mxu0 0
  %143 = vmatpush1.bf16.msra.mxu0 %v121
  %144 = vmatprep.subr.bf16.mxu0 0
  %145 = vmatpush1.bf16.msra.mxu0 %v122
  %146 = vmatprep.subr.bf16.mxu0 0
  %147 = vmatpush1.bf16.msra.mxu0 %v123
  %148 = vmatprep.subr.bf16.mxu0 0
  %149 = vmatpush1.bf16.msra.mxu0 0
  %150 = vmatprep.subr.bf16.mxu0 0
  %151 = vmatpush1.bf16.msra.mxu0 0
  %152 = vmatprep.subr.bf16.mxu0 0
  %153 = vmatpush1.bf16.msra.mxu0 0
  %154 = vmatprep.subr.bf16.mxu0 0
  %155 = vmatpush1.bf16.msra.mxu0 0
  %156 = vmatprep.subr.bf16.mxu0 0
  %157 = vmatpush1.bf16.msra.mxu0 0
  %158 = vmatprep.subr.bf16.mxu0 0
  %159 = vmatpush1.bf16.msra.mxu0 0
  %160 = vmatprep.subr.bf16.mxu0 0
  %161 = vmatpush1.bf16.msra.mxu0 0
  %162 = vmatprep.subr.bf16.mxu0 0
  %163 = vmatpush1.bf16.msra.mxu0 0
  %164 = vmatprep.mubr.bf16.mxu0 0
  %165 = vmatmul.mubr.bf16.gmra.mrb[0].mxu0 %v60
  %v166 = vpop.f32.mrb[0].mxu0
  %v167 = vadd.f32 0.0, %v166
  %v168 = vpop.f32.mrb[0].mxu0
  %v169 = vpop.f32.mrb[0].mxu0
  %v170 = vadd.f32 0.0, %v169
  %v171 = vpop.f32.mrb[0].mxu0
  %172 = vmatprep.mubr.bf16.mxu0 0
  %173 = vmatmul.mubr.bf16.gmra.mrb[0].mxu0 %v61
  %v174 = vpop.f32.mrb[0].mxu0
  %v175 = vadd.f32 0.0, %v174
  %v176 = vpop.f32.mrb[0].mxu0
  %v177 = vpop.f32.mrb[0].mxu0
  %v178 = vadd.f32 0.0, %v177
  %v179 = vpop.f32.mrb[0].mxu0
  %180 = vmatprep.mubr.bf16.mxu0 0
  %181 = vmatmul.mubr.bf16.gmra.mrb[0].mxu0 %v62
  %v182 = vpop.f32.mrb[0].mxu0
  %v183 = vadd.f32 0.0, %v182
  %v184 = vpop.f32.mrb[0].mxu0
  %v185 = vpop.f32.mrb[0].mxu0
  %v186 = vadd.f32 0.0, %v185
  %v187 = vpop.f32.mrb[0].mxu0
  %188 = vmatprep.mubr.bf16.mxu0 0
  %189 = vmatmul.mubr.bf16.gmra.mrb[0].mxu0 %v63
  %v190 = vpop.f32.mrb[0].mxu0
  %v191 = vadd.f32 0.0, %v190
  %v192 = vpop.f32.mrb[0].mxu0
  %v193 = vpop.f32.mrb[0].mxu0
  %v194 = vadd.f32 0.0, %v193
  %v195 = vpop.f32.mrb[0].mxu0
  %196 = vmatprep.mubr.bf16.mxu0 0
  %197 = vmatmul.mubr.bf16.gmra.mrb[0].mxu0 %v64
  %v198 = vpop.f32.mrb[0].mxu0
  %v199 = vadd.f32 0.0, %v198
  %v200 = vpop.f32.mrb[0].mxu0
  %v201 = vpop.f32.mrb[0].mxu0
  %v202 = vadd.f32 0.0, %v201
  %v203 = vpop.f32.mrb[0].mxu0
  %204 = vmatprep.mubr.bf16.mxu0 0
  %205 = vmatmul.mubr.bf16.gmra.mrb[0].mxu0 %v65
  %v206 = vpop.f32.mrb[0].mxu0
  %v207 = vadd.f32 0.0, %v206
  %v208 = vpop.f32.mrb[0].mxu0
  %v209 = vpop.f32.mrb[0].mxu0
  %v210 = vadd.f32 0.0, %v209
  %v211 = vpop.f32.mrb[0].mxu0
  %212 = vmatprep.mubr.bf16.mxu0 0
  %213 = vmatmul.mubr.bf16.gmra.mrb[0].mxu0 %v66
  %v214 = vpop.f32.mrb[0].mxu0
  %v215 = vadd.f32 0.0, %v214
  %v216 = vpop.f32.mrb[0].mxu0
  %v217 = vpop.f32.mrb[0].mxu0
  %v218 = vadd.f32 0.0, %v217
  %v219 = vpop.f32.mrb[0].mxu0
  %220 = vmatprep.mubr.bf16.mxu0 0
  %221 = vmatmul.mubr.bf16.gmra.mrb[0].mxu0 %v67
  %v222 = vpop.f32.mrb[0].mxu0
  %v223 = vadd.f32 0.0, %v222
  %v224 = vpop.f32.mrb[0].mxu0
  %v225 = vpop.f32.mrb[0].mxu0
  %v226 = vadd.f32 0.0, %v225
  %v227 = vpop.f32.mrb[0].mxu0
  %228 = vdwg.mxu0
  %v229 = vadd.f32 %v68, %v167
  %v230 = vadd.f32 %v69, %v170
  %v231 = vadd.f32 %v70, %v175
  %v232 = vadd.f32 %v71, %v178
  %v233 = vadd.f32 %v72, %v183
  %v234 = vadd.f32 %v73, %v186
  %v235 = vadd.f32 %v74, %v191
  %v236 = vadd.f32 %v75, %v194
  %v237 = vadd.f32 %v76, %v199
  %v238 = vadd.f32 %v77, %v202
  %v239 = vadd.f32 %v78, %v207
  %v240 = vadd.f32 %v79, %v210
  %v241 = vadd.f32 %v80, %v215
  %v242 = vadd.f32 %v81, %v218
  %v243 = vadd.f32 %v82, %v223
  %v244 = vadd.f32 %v83, %v226
  %245 = vst [vmem:[#allocation2] sm:$0xff] %v229
  %246 = vst [vmem:[#allocation2 + $0x8] sm:$0xff] %v230
  %247 = vst [vmem:[#allocation2 + $0x10] sm:$0xff] %v231
  %248 = vst [vmem:[#allocation2 + $0x18] sm:$0xff] %v232
  %249 = vst [vmem:[#allocation2 + $0x20] sm:$0xff] %v233
  %250 = vst [vmem:[#allocation2 + $0x28] sm:$0xff] %v234
  %251 = vst [vmem:[#allocation2 + $0x30] sm:$0xff] %v235
  %252 = vst [vmem:[#allocation2 + $0x38] sm:$0xff] %v236
  %253 = vst [vmem:[#allocation2 + $0x40] sm:$0xff] %v237
  %254 = vst [vmem:[#allocation2 + $0x48] sm:$0xff] %v238
  %255 = vst [vmem:[#allocation2 + $0x50] sm:$0xff] %v239
  %256 = vst [vmem:[#allocation2 + $0x58] sm:$0xff] %v240
  %257 = vst [vmem:[#allocation2 + $0x60] sm:$0xff] %v241
  %258 = vst [vmem:[#allocation2 + $0x68] sm:$0xff] %v242
  %259 = vst [vmem:[#allocation2 + $0x70] sm:$0xff] %v243
  %260 = vst [vmem:[#allocation2 + $0x78] sm:$0xff] %v244
  // Predicated region
  $region18: #{sage_forward.7} parent=0 // pred_check
    %p261 = pneg %p15
  $region19: #{sage_forward.7} parent=0 // pred_check_branch
    %263 = sbr.rel (%p261) target = $region21
  $region20: #{sage_forward.7} parent=0 // pred_region
    %v264 = vld [vmem:[#allocation2] sm:$0xff]
    %v265 = vld [vmem:[#allocation2 + $0x8] sm:$0xff]
    %v266 = vld [vmem:[#allocation2 + $0x10] sm:$0xff]
    %v267 = vld [vmem:[#allocation2 + $0x18] sm:$0xff]
    %v268 = vld [vmem:[#allocation2 + $0x20] sm:$0xff]
    %v269 = vld [vmem:[#allocation2 + $0x28] sm:$0xff]
    %v270 = vld [vmem:[#allocation2 + $0x30] sm:$0xff]
    %v271 = vld [vmem:[#allocation2 + $0x38] sm:$0xff]
    %v272 = vld [vmem:[#allocation2 + $0x40] sm:$0xff]
    %v273 = vld [vmem:[#allocation2 + $0x48] sm:$0xff]
    %v274 = vld [vmem:[#allocation2 + $0x50] sm:$0xff]
    %v275 = vld [vmem:[#allocation2 + $0x58] sm:$0xff]
    %v276 = vld [vmem:[#allocation2 + $0x60] sm:$0xff]
    %v277 = vld [vmem:[#allocation2 + $0x68] sm:$0xff]
    %v278 = vld [vmem:[#allocation2 + $0x70] sm:$0xff]
    %v279 = vld [vmem:[#allocation2 + $0x78] sm:$0xff]
    %v280 = vld [vmem:[%s2] sm:$0xff]
    %v281 = vld [vmem:[%s2 + $0x8] sm:$0xff]
    %v282 = vld [vmem:[%s2 + $0x10] sm:$0xff]
    %v283 = vld [vmem:[%s2 + $0x18] sm:$0xff]
    %v284 = vld [vmem:[%s2 + $0x20] sm:$0xff]
    %v285 = vld [vmem:[%s2 + $0x28] sm:$0xff]
    %v286 = vld [vmem:[%s2 + $0x30] sm:$0xff]
    %v287 = vld [vmem:[%s2 + $0x38] sm:$0xff]
    %v288 = vld [vmem:[%s2 + $0x40] sm:$0xff]
    %v289 = vld [vmem:[%s2 + $0x48] sm:$0xff]
    %v290 = vld [vmem:[%s2 + $0x50] sm:$0xff]
    %v291 = vld [vmem:[%s2 + $0x58] sm:$0xff]
    %v292 = vld [vmem:[%s2 + $0x60] sm:$0xff]
    %v293 = vld [vmem:[%s2 + $0x68] sm:$0xff]
    %v294 = vld [vmem:[%s2 + $0x70] sm:$0xff]
    %v295 = vld [vmem:[%s2 + $0x78] sm:$0xff]
    %297 = vset.pattern.permute.xlu0 0
    %298 = vperm.xlu0 %297, %v280
    %v299 = vpop.permute.xlu0 %298
    %302 = vset.pattern.permute.xlu0 0
    %303 = vperm.xlu0 %302, %v281
    %v304 = vpop.permute.xlu0 %303
    %307 = vset.pattern.permute.xlu0 0
    %308 = vperm.xlu0 %307, %v282
    %v309 = vpop.permute.xlu0 %308
    %312 = vset.pattern.permute.xlu0 0
    %313 = vperm.xlu0 %312, %v283
    %v314 = vpop.permute.xlu0 %313
    %317 = vset.pattern.permute.xlu0 0
    %318 = vperm.xlu0 %317, %v284
    %v319 = vpop.permute.xlu0 %318
    %322 = vset.pattern.permute.xlu0 0
    %323 = vperm.xlu0 %322, %v285
    %v324 = vpop.permute.xlu0 %323
    %327 = vset.pattern.permute.xlu0 0
    %328 = vperm.xlu0 %327, %v286
    %v329 = vpop.permute.xlu0 %328
    %332 = vset.pattern.permute.xlu0 0
    %333 = vperm.xlu0 %332, %v287
    %v334 = vpop.permute.xlu0 %333
    %337 = vset.pattern.permute.xlu0 0
    %338 = vperm.xlu0 %337, %v288
    %v339 = vpop.permute.xlu0 %338
    %342 = vset.pattern.permute.xlu0 0
    %343 = vperm.xlu0 %342, %v289
    %v344 = vpop.permute.xlu0 %343
    %347 = vset.pattern.permute.xlu0 0
    %348 = vperm.xlu0 %347, %v290
    %v349 = vpop.permute.xlu0 %348
    %352 = vset.pattern.permute.xlu0 0
    %353 = vperm.xlu0 %352, %v291
    %v354 = vpop.permute.xlu0 %353
    %357 = vset.pattern.permute.xlu0 0
    %358 = vperm.xlu0 %357, %v292
    %v359 = vpop.permute.xlu0 %358
    %362 = vset.pattern.permute.xlu0 0
    %363 = vperm.xlu0 %362, %v293
    %v364 = vpop.permute.xlu0 %363
    %367 = vset.pattern.permute.xlu0 0
    %368 = vperm.xlu0 %367, %v294
    %v369 = vpop.permute.xlu0 %368
    %372 = vset.pattern.permute.xlu0 0
    %373 = vperm.xlu0 %372, %v295
    %v374 = vpop.permute.xlu0 %373
    %v376 = vmul.f32 %v264, %v299
    %v377 = vmul.f32 %v265, %v304
    %v378 = vmul.f32 %v266, %v309
    %v379 = vmul.f32 %v267, %v314
    %v380 = vmul.f32 %v268, %v319
    %v381 = vmul.f32 %v269, %v324
    %v382 = vmul.f32 %v270, %v329
    %v383 = vmul.f32 %v271, %v334
    %v384 = vmul.f32 %v272, %v339
    %v385 = vmul.f32 %v273, %v344
    %v386 = vmul.f32 %v274, %v349
    %v387 = vmul.f32 %v275, %v354
    %v388 = vmul.f32 %v276, %v359
    %v389 = vmul.f32 %v277, %v364
    %v390 = vmul.f32 %v278, %v369
    %v391 = vmul.f32 %v279, %v374
    %392 = vst [vmem:[%s3] sm:$0xff] %v376
    %393 = vst [vmem:[%s3 + $0x8] sm:$0xff] %v377
    %394 = vst [vmem:[%s3 + $0x10] sm:$0xff] %v378
    %395 = vst [vmem:[%s3 + $0x18] sm:$0xff] %v379
    %396 = vst [vmem:[%s3 + $0x20] sm:$0xff] %v380
    %397 = vst [vmem:[%s3 + $0x28] sm:$0xff] %v381
    %398 = vst [vmem:[%s3 + $0x30] sm:$0xff] %v382
    %399 = vst [vmem:[%s3 + $0x38] sm:$0xff] %v383
    %400 = vst [vmem:[%s3 + $0x40] sm:$0xff] %v384
    %401 = vst [vmem:[%s3 + $0x48] sm:$0xff] %v385
    %402 = vst [vmem:[%s3 + $0x50] sm:$0xff] %v386
    %403 = vst [vmem:[%s3 + $0x58] sm:$0xff] %v387
    %404 = vst [vmem:[%s3 + $0x60] sm:$0xff] %v388
    %405 = vst [vmem:[%s3 + $0x68] sm:$0xff] %v389
    %406 = vst [vmem:[%s3 + $0x70] sm:$0xff] %v390
    %407 = vst [vmem:[%s3 + $0x78] sm:$0xff] %v391
  $region21: #{sage_forward.7} parent=0 // pred_fallthru
    _
  // Predicated region
  $region22: #{sage_forward.7} parent=0 // pred_check
    _
  $region23: #{sage_forward.7} parent=0 // pred_check_branch
    %409 = sbr.rel (0) target = $region25
  $region24: #{sage_forward.7} parent=0 // pred_region
    _
  $region25: #{sage_forward.7} parent=0 // pred_fallthru
    _
  // Predicated region
  $region26: #{sage_forward.7} parent=0 // pred_check
    _
  $region27: #{sage_forward.7} parent=0 // pred_check_branch
    %411 = sbr.rel (0) target = $region29
  $region28: #{sage_forward.7} parent=0 // pred_region
    _
  $region29: #{sage_forward.7} parent=0 // pred_fallthru
    _

// kernel: sage_forward.4
$region0: #{sage_forward.4}
  #allocation0 [shape = 'u32[]', space=smem, size = 0x4, offset = 0x4, fixed_abs, tag = 'smem constant byte address 0x4 - core index']
  #allocation1 [shape = 'u32[144,128]{1,0:T(1,128)}', space=vmem, size = 0x12000, scoped, tag = 'internal scratch']
  %s0 = inlined_call_operand.vmem [shape: bf16[128,128], index: 0, kind: input, shape index: {}]
  %s1 = inlined_call_operand.vmem [shape: bf16[128,128], index: 1, kind: input, shape index: {}]
  %s2 = inlined_call_operand.vmem [shape: f32[1,128], index: 2, kind: input, shape index: {}]
  %s3 = inlined_call_operand.vmem [shape: f32[128,1], index: 3, kind: input, shape index: {}]
  %s4 = inlined_call_operand.vmem [shape: bf16[128,128], index: 4, kind: output, shape index: {}]
  %s5 = sld [smem:[#allocation0]]
  $region26: #{sage_forward.4} parent=0
    _
  %s7 = ssub.s32 1, %s5
  %s8 = scalar_select 0, %s7, %s5
  // Predicated region
  $region2: #{sage_forward.4} parent=0 // pred_check
    _
  $region3: #{sage_forward.4} parent=0 // pred_check_branch
    %10 = sbr.rel (0) target = $region5
  $region4: #{sage_forward.4} parent=0 // pred_region
    _
  $region5: #{sage_forward.4} parent=0 // pred_fallthru
    _
  // Predicated region
  $region6: #{sage_forward.4} parent=0 // pred_check
    _
  $region7: #{sage_forward.4} parent=0 // pred_check_branch
    %12 = sbr.rel (0) target = $region9
  $region8: #{sage_forward.4} parent=0 // pred_region
    _
  $region9: #{sage_forward.4} parent=0 // pred_fallthru
    _
  // Predicated region
  $region10: #{sage_forward.4} parent=0 // pred_check
    _
  $region11: #{sage_forward.4} parent=0 // pred_check_branch
    %14 = sbr.rel (0) target = $region13
  $region12: #{sage_forward.4} parent=0 // pred_region
    _
  $region13: #{sage_forward.4} parent=0 // pred_fallthru
    _
  // Predicated region
  $region14: #{sage_forward.4} parent=0 // pred_check
    _
  $region15: #{sage_forward.4} parent=0 // pred_check_branch
    %16 = sbr.rel (0) target = $region17
  $region16: #{sage_forward.4} parent=0 // pred_region
    _
  $region17: #{sage_forward.4} parent=0 // pred_fallthru
    _
  %v18 = vld [vmem:[%s0] sm:$0xf]
  %v19 = vld [vmem:[%s0 + $0x4] sm:$0xf]
  %v20 = vld [vmem:[%s0 + $0x8] sm:$0xf]
  %v21 = vld [vmem:[%s0 + $0xc] sm:$0xf]
  %v22 = vld [vmem:[%s0 + $0x10] sm:$0xf]
  %v23 = vld [vmem:[%s0 + $0x14] sm:$0xf]
  %v24 = vld [vmem:[%s0 + $0x18] sm:$0xf]
  %v25 = vld [vmem:[%s0 + $0x1c] sm:$0xf]
  %v26 = vld [vmem:[%s0 + $0x20] sm:$0xf]
  %v27 = vld [vmem:[%s0 + $0x24] sm:$0xf]
  %v28 = vld [vmem:[%s0 + $0x28] sm:$0xf]
  %v29 = vld [vmem:[%s0 + $0x2c] sm:$0xf]
  %v30 = vld [vmem:[%s0 + $0x30] sm:$0xf]
  %v31 = vld [vmem:[%s0 + $0x34] sm:$0xf]
  %v32 = vld [vmem:[%s0 + $0x38] sm:$0xf]
  %v33 = vld [vmem:[%s0 + $0x3c] sm:$0xf]
  %v34 = vld [vmem:[%s1] sm:$0xf]
  %v35 = vld [vmem:[%s1 + $0x4] sm:$0xf]
  %v36 = vld [vmem:[%s1 + $0x8] sm:$0xf]
  %v37 = vld [vmem:[%s1 + $0xc] sm:$0xf]
  %v38 = vld [vmem:[%s1 + $0x10] sm:$0xf]
  %v39 = vld [vmem:[%s1 + $0x14] sm:$0xf]
  %v40 = vld [vmem:[%s1 + $0x18] sm:$0xf]
  %v41 = vld [vmem:[%s1 + $0x1c] sm:$0xf]
  %v42 = vld [vmem:[%s1 + $0x20] sm:$0xf]
  %v43 = vld [vmem:[%s1 + $0x24] sm:$0xf]
  %v44 = vld [vmem:[%s1 + $0x28] sm:$0xf]
  %v45 = vld [vmem:[%s1 + $0x2c] sm:$0xf]
  %v46 = vld [vmem:[%s1 + $0x30] sm:$0xf]
  %v47 = vld [vmem:[%s1 + $0x34] sm:$0xf]
  %v48 = vld [vmem:[%s1 + $0x38] sm:$0xf]
  %v49 = vld [vmem:[%s1 + $0x3c] sm:$0xf]
  %v50 = vld [vmem:[%s3] sm:$0xff]
  %v51 = vld [vmem:[%s3 + $0x8] sm:$0xff]
  %v52 = vld [vmem:[%s3 + $0x10] sm:$0xff]
  %v53 = vld [vmem:[%s3 + $0x18] sm:$0xff]
  %v54 = vld [vmem:[%s3 + $0x20] sm:$0xff]
  %v55 = vld [vmem:[%s3 + $0x28] sm:$0xff]
  %v56 = vld [vmem:[%s3 + $0x30] sm:$0xff]
  %v57 = vld [vmem:[%s3 + $0x38] sm:$0xff]
  %v58 = vld [vmem:[%s3 + $0x40] sm:$0xff]
  %v59 = vld [vmem:[%s3 + $0x48] sm:$0xff]
  %v60 = vld [vmem:[%s3 + $0x50] sm:$0xff]
  %v61 = vld [vmem:[%s3 + $0x58] sm:$0xff]
  %v62 = vld [vmem:[%s3 + $0x60] sm:$0xff]
  %v63 = vld [vmem:[%s3 + $0x68] sm:$0xff]
  %v64 = vld [vmem:[%s3 + $0x70] sm:$0xff]
  %v65 = vld [vmem:[%s3 + $0x78] sm:$0xff]
  %v66 = vld [vmem:[%s2] sm:$0x1]
  %68 = vset.pattern.permute.xlu0 0
  %69 = vperm.xlu0 %68, %v50
  %v70 = vpop.permute.xlu0 %69
  %73 = vset.pattern.permute.xlu0 0
  %74 = vperm.xlu0 %73, %v51
  %v75 = vpop.permute.xlu0 %74
  %78 = vset.pattern.permute.xlu0 0
  %79 = vperm.xlu0 %78, %v52
  %v80 = vpop.permute.xlu0 %79
  %83 = vset.pattern.permute.xlu0 0
  %84 = vperm.xlu0 %83, %v53
  %v85 = vpop.permute.xlu0 %84
  %88 = vset.pattern.permute.xlu0 0
  %89 = vperm.xlu0 %88, %v54
  %v90 = vpop.permute.xlu0 %89
  %93 = vset.pattern.permute.xlu0 0
  %94 = vperm.xlu0 %93, %v55
  %v95 = vpop.permute.xlu0 %94
  %98 = vset.pattern.permute.xlu0 0
  %99 = vperm.xlu0 %98, %v56
  %v100 = vpop.permute.xlu0 %99
  %103 = vset.pattern.permute.xlu0 0
  %104 = vperm.xlu0 %103, %v57
  %v105 = vpop.permute.xlu0 %104
  %108 = vset.pattern.permute.xlu0 0
  %109 = vperm.xlu0 %108, %v58
  %v110 = vpop.permute.xlu0 %109
  %113 = vset.pattern.permute.xlu0 0
  %114 = vperm.xlu0 %113, %v59
  %v115 = vpop.permute.xlu0 %114
  %118 = vset.pattern.permute.xlu0 0
  %119 = vperm.xlu0 %118, %v60
  %v120 = vpop.permute.xlu0 %119
  %123 = vset.pattern.permute.xlu0 0
  %124 = vperm.xlu0 %123, %v61
  %v125 = vpop.permute.xlu0 %124
  %128 = vset.pattern.permute.xlu0 0
  %129 = vperm.xlu0 %128, %v62
  %v130 = vpop.permute.xlu0 %129
  %133 = vset.pattern.permute.xlu0 0
  %134 = vperm.xlu0 %133, %v63
  %v135 = vpop.permute.xlu0 %134
  %138 = vset.pattern.permute.xlu0 0
  %139 = vperm.xlu0 %138, %v64
  %v140 = vpop.permute.xlu0 %139
  %143 = vset.pattern.permute.xlu0 0
  %144 = vperm.xlu0 %143, %v65
  %v145 = vpop.permute.xlu0 %144
  %v148 = vlaneseq
  %v149 = vshrl.u32 %v148, 7
  %v150 = vsub.s32 0, %v149
  %v151 = vrot.slane %v66, %v150
  %v153 = vmul.f32 %v70, %v151
  %v154 = vmul.f32 %v75, %v151
  %v155 = vmul.f32 %v80, %v151
  %v156 = vmul.f32 %v85, %v151
  %v157 = vmul.f32 %v90, %v151
  %v158 = vmul.f32 %v95, %v151
  %v159 = vmul.f32 %v100, %v151
  %v160 = vmul.f32 %v105, %v151
  %v161 = vmul.f32 %v110, %v151
  %v162 = vmul.f32 %v115, %v151
  %v163 = vmul.f32 %v120, %v151
  %v164 = vmul.f32 %v125, %v151
  %v165 = vmul.f32 %v130, %v151
  %v166 = vmul.f32 %v135, %v151
  %v167 = vmul.f32 %v140, %v151
  %v168 = vmul.f32 %v145, %v151
  %v185 = vunpack.c.l.b16 %v18
  %v186 = vunpack.c.l.b16 %v19
  %v187 = vunpack.c.l.b16 %v20
  %v188 = vunpack.c.l.b16 %v21
  %v189 = vunpack.c.l.b16 %v22
  %v190 = vunpack.c.l.b16 %v23
  %v191 = vunpack.c.l.b16 %v24
  %v192 = vunpack.c.l.b16 %v25
  %v193 = vunpack.c.l.b16 %v26
  %v194 = vunpack.c.l.b16 %v27
  %v195 = vunpack.c.l.b16 %v28
  %v196 = vunpack.c.l.b16 %v29
  %v197 = vunpack.c.l.b16 %v30
  %v198 = vunpack.c.l.b16 %v31
  %v199 = vunpack.c.l.b16 %v32
  %v200 = vunpack.c.l.b16 %v33
  %v201 = vpack.c.b16 %v186, %v185
  %v202 = vpack.c.b16 %v188, %v187
  %v203 = vpack.c.b16 %v190, %v189
  %v204 = vpack.c.b16 %v192, %v191
  %v205 = vpack.c.b16 %v194, %v193
  %v206 = vpack.c.b16 %v196, %v195
  %v207 = vpack.c.b16 %v198, %v197
  %v208 = vpack.c.b16 %v200, %v199
  %v233 = vunpack.c.l.b16 %v34
  %v234 = vunpack.c.l.b16 %v35
  %v235 = vunpack.c.l.b16 %v36
  %v236 = vunpack.c.l.b16 %v37
  %v237 = vunpack.c.l.b16 %v38
  %v238 = vunpack.c.l.b16 %v39
  %v239 = vunpack.c.l.b16 %v40
  %v240 = vunpack.c.l.b16 %v41
  %v241 = vunpack.c.l.b16 %v42
  %v242 = vunpack.c.l.b16 %v43
  %v243 = vunpack.c.l.b16 %v44
  %v244 = vunpack.c.l.b16 %v45
  %v245 = vunpack.c.l.b16 %v46
  %v246 = vunpack.c.l.b16 %v47
  %v247 = vunpack.c.l.b16 %v48
  %v248 = vunpack.c.l.b16 %v49
  %v249 = vpack.c.b16 %v234, %v233
  %v250 = vpack.c.b16 %v236, %v235
  %v251 = vpack.c.b16 %v238, %v237
  %v252 = vpack.c.b16 %v240, %v239
  %v253 = vpack.c.b16 %v242, %v241
  %v254 = vpack.c.b16 %v244, %v243
  %v255 = vpack.c.b16 %v246, %v245
  %v256 = vpack.c.b16 %v248, %v247
  %265 = vmatprep.subr.bf16.mxu0 0
  %266 = vmatpush1.bf16.msra.mxu0 %v249
  %267 = vmatprep.subr.bf16.mxu0 0
  %268 = vmatpush1.bf16.msra.mxu0 %v250
  %269 = vmatprep.subr.bf16.mxu0 0
  %270 = vmatpush1.bf16.msra.mxu0 %v251
  %271 = vmatprep.subr.bf16.mxu0 0
  %272 = vmatpush1.bf16.msra.mxu0 %v252
  %273 = vmatprep.subr.bf16.mxu0 0
  %274 = vmatpush1.bf16.msra.mxu0 %v253
  %275 = vmatprep.subr.bf16.mxu0 0
  %276 = vmatpush1.bf16.msra.mxu0 %v254
  %277 = vmatprep.subr.bf16.mxu0 0
  %278 = vmatpush1.bf16.msra.mxu0 %v255
  %279 = vmatprep.subr.bf16.mxu0 0
  %280 = vmatpush1.bf16.msra.mxu0 %v256
  %281 = vmatprep.subr.bf16.mxu0 0
  %282 = vmatpush1.bf16.msra.mxu0 0
  %283 = vmatprep.subr.bf16.mxu0 0
  %284 = vmatpush1.bf16.msra.mxu0 0
  %285 = vmatprep.subr.bf16.mxu0 0
  %286 = vmatpush1.bf16.msra.mxu0 0
  %287 = vmatprep.subr.bf16.mxu0 0
  %288 = vmatpush1.bf16.msra.mxu0 0
  %289 = vmatprep.subr.bf16.mxu0 0
  %290 = vmatpush1.bf16.msra.mxu0 0
  %291 = vmatprep.subr.bf16.mxu0 0
  %292 = vmatpush1.bf16.msra.mxu0 0
  %293 = vmatprep.subr.bf16.mxu0 0
  %294 = vmatpush1.bf16.msra.mxu0 0
  %295 = vmatprep.subr.bf16.mxu0 0
  %296 = vmatpush1.bf16.msra.mxu0 0
  %297 = vmatprep.mubr.bf16.mxu0 0
  %298 = vmatmul.mubr.bf16.gmra.mrb[0].mxu0 %v201
  %v299 = vpop.f32.mrb[0].mxu0
  %v300 = vadd.f32 %v153, %v299
  %v301 = vpop.f32.mrb[0].mxu0
  %v302 = vpop.f32.mrb[0].mxu0
  %v303 = vadd.f32 %v154, %v302
  %v304 = vpop.f32.mrb[0].mxu0
  %305 = vmatprep.mubr.bf16.mxu0 0
  %306 = vmatmul.mubr.bf16.gmra.mrb[0].mxu0 %v202
  %v307 = vpop.f32.mrb[0].mxu0
  %v308 = vadd.f32 %v155, %v307
  %v309 = vpop.f32.mrb[0].mxu0
  %v310 = vpop.f32.mrb[0].mxu0
  %v311 = vadd.f32 %v156, %v310
  %v312 = vpop.f32.mrb[0].mxu0
  %313 = vmatprep.mubr.bf16.mxu0 0
  %314 = vmatmul.mubr.bf16.gmra.mrb[0].mxu0 %v203
  %v315 = vpop.f32.mrb[0].mxu0
  %v316 = vadd.f32 %v157, %v315
  %v317 = vpop.f32.mrb[0].mxu0
  %v318 = vpop.f32.mrb[0].mxu0
  %v319 = vadd.f32 %v158, %v318
  %v320 = vpop.f32.mrb[0].mxu0
  %321 = vmatprep.mubr.bf16.mxu0 0
  %322 = vmatmul.mubr.bf16.gmra.mrb[0].mxu0 %v204
  %v323 = vpop.f32.mrb[0].mxu0
  %v324 = vadd.f32 %v159, %v323
  %v325 = vpop.f32.mrb[0].mxu0
  %v326 = vpop.f32.mrb[0].mxu0
  %v327 = vadd.f32 %v160, %v326
  %v328 = vpop.f32.mrb[0].mxu0
  %329 = vmatprep.mubr.bf16.mxu0 0
  %330 = vmatmul.mubr.bf16.gmra.mrb[0].mxu0 %v205
  %v331 = vpop.f32.mrb[0].mxu0
  %v332 = vadd.f32 %v161, %v331
  %v333 = vpop.f32.mrb[0].mxu0
  %v334 = vpop.f32.mrb[0].mxu0
  %v335 = vadd.f32 %v162, %v334
  %v336 = vpop.f32.mrb[0].mxu0
  %337 = vmatprep.mubr.bf16.mxu0 0
  %338 = vmatmul.mubr.bf16.gmra.mrb[0].mxu0 %v206
  %v339 = vpop.f32.mrb[0].mxu0
  %v340 = vadd.f32 %v163, %v339
  %v341 = vpop.f32.mrb[0].mxu0
  %v342 = vpop.f32.mrb[0].mxu0
  %v343 = vadd.f32 %v164, %v342
  %v344 = vpop.f32.mrb[0].mxu0
  %345 = vmatprep.mubr.bf16.mxu0 0
  %346 = vmatmul.mubr.bf16.gmra.mrb[0].mxu0 %v207
  %v347 = vpop.f32.mrb[0].mxu0
  %v348 = vadd.f32 %v165, %v347
  %v349 = vpop.f32.mrb[0].mxu0
  %v350 = vpop.f32.mrb[0].mxu0
  %v351 = vadd.f32 %v166, %v350
  %v352 = vpop.f32.mrb[0].mxu0
  %353 = vmatprep.mubr.bf16.mxu0 0
  %354 = vmatmul.mubr.bf16.gmra.mrb[0].mxu0 %v208
  %v355 = vpop.f32.mrb[0].mxu0
  %v356 = vadd.f32 %v167, %v355
  %v357 = vpop.f32.mrb[0].mxu0
  %v358 = vpop.f32.mrb[0].mxu0
  %v359 = vadd.f32 %v168, %v358
  %v360 = vpop.f32.mrb[0].mxu0
  %361 = vdwg.mxu0
  %v362 = vpack.c.bf16 %v303, %v300
  %v363 = vpack.c.bf16 %v311, %v308
  %v364 = vpack.c.bf16 %v319, %v316
  %v365 = vpack.c.bf16 %v327, %v324
  %v366 = vpack.c.bf16 %v335, %v332
  %v367 = vpack.c.bf16 %v343, %v340
  %v368 = vpack.c.bf16 %v351, %v348
  %v369 = vpack.c.bf16 %v359, %v356
  %v378 = vunpack.c.l.b16 %v362
  %v379 = vunpack.c.h.b16 %v362
  %v380 = vunpack.c.l.b16 %v363
  %v381 = vunpack.c.h.b16 %v363
  %v382 = vunpack.c.l.b16 %v364
  %v383 = vunpack.c.h.b16 %v364
  %v384 = vunpack.c.l.b16 %v365
  %v385 = vunpack.c.h.b16 %v365
  %v386 = vunpack.c.l.b16 %v366
  %v387 = vunpack.c.h.b16 %v366
  %v388 = vunpack.c.l.b16 %v367
  %v389 = vunpack.c.h.b16 %v367
  %v390 = vunpack.c.l.b16 %v368
  %v391 = vunpack.c.h.b16 %v368
  %v392 = vunpack.c.l.b16 %v369
  %v393 = vunpack.c.h.b16 %v369
  %v394 = vpack.c.b16 %v378, %v378
  %v395 = vpack.c.b16 %v379, %v379
  %v396 = vpack.c.b16 %v380, %v380
  %v397 = vpack.c.b16 %v381, %v381
  %v398 = vpack.c.b16 %v382, %v382
  %v399 = vpack.c.b16 %v383, %v383
  %v400 = vpack.c.b16 %v384, %v384
  %v401 = vpack.c.b16 %v385, %v385
  %v402 = vpack.c.b16 %v386, %v386
  %v403 = vpack.c.b16 %v387, %v387
  %v404 = vpack.c.b16 %v388, %v388
  %v405 = vpack.c.b16 %v389, %v389
  %v406 = vpack.c.b16 %v390, %v390
  %v407 = vpack.c.b16 %v391, %v391
  %v408 = vpack.c.b16 %v392, %v392
  %v409 = vpack.c.b16 %v393, %v393
  %426 = vst [vmem:[%s4] sm:$0xf] %v394
  %427 = vst [vmem:[%s4 + $0x4] sm:$0xf] %v395
  %428 = vst [vmem:[%s4 + $0x8] sm:$0xf] %v396
  %429 = vst [vmem:[%s4 + $0xc] sm:$0xf] %v397
  %430 = vst [vmem:[%s4 + $0x10] sm:$0xf] %v398
  %431 = vst [vmem:[%s4 + $0x14] sm:$0xf] %v399
  %432 = vst [vmem:[%s4 + $0x18] sm:$0xf] %v400
  %433 = vst [vmem:[%s4 + $0x1c] sm:$0xf] %v401
  %434 = vst [vmem:[%s4 + $0x20] sm:$0xf] %v402
  %435 = vst [vmem:[%s4 + $0x24] sm:$0xf] %v403
  %436 = vst [vmem:[%s4 + $0x28] sm:$0xf] %v404
  %437 = vst [vmem:[%s4 + $0x2c] sm:$0xf] %v405
  %438 = vst [vmem:[%s4 + $0x30] sm:$0xf] %v406
  %439 = vst [vmem:[%s4 + $0x34] sm:$0xf] %v407
  %440 = vst [vmem:[%s4 + $0x38] sm:$0xf] %v408
  %441 = vst [vmem:[%s4 + $0x3c] sm:$0xf] %v409
  // Predicated region
  $region18: #{sage_forward.4} parent=0 // pred_check
    _
  $region19: #{sage_forward.4} parent=0 // pred_check_branch
    %443 = sbr.rel (0) target = $region21
  $region20: #{sage_forward.4} parent=0 // pred_region
    _
  $region21: #{sage_forward.4} parent=0 // pred_fallthru
    _
  // Predicated region
  $region22: #{sage_forward.4} parent=0 // pred_check
    _
  $region23: #{sage_forward.4} parent=0 // pred_check_branch
    %445 = sbr.rel (0) target = $region25
  $region24: #{sage_forward.4} parent=0 // pred_region
    _
  $region25: #{sage_forward.4} parent=0 // pred_fallthru
    _

</llo_original>
